<compile_context>
chip_gen: v7x
topology: tpu7x:2x2x1
jax: 0.10.0
libtpu: 0.0.40
codegen_flags: <defaults>
</compile_context>

<pallas_src>
import functools
import math

import numpy as np
import jax
import jax.numpy as jnp
from jax import lax
from jax.experimental import pallas as pl
from jax.experimental.pallas import tpu as pltpu


_LN_EPS = 1e-5
_INV_SQRT2 = 1.0 / math.sqrt(2.0)

# Weights at or below this size are held fully VMEM-resident (single (K, N)
# block).  Keeps double-buffered weight + activation tiles under the v7x
# 64 MiB physical VMEM; v5e/v6e (128 MiB) have ample headroom.
_WEIGHT_RESIDENT_BYTES = 12 * 1024 * 1024
_DEFAULT_VMEM_LIMIT = 32 * 1024 * 1024      # Mosaic default scoped VMEM limit
_MAX_VMEM_LIMIT = 64 * 1024 * 1024          # v7x physical VMEM per TensorCore


def _round_up(x, m):
    return ((x + m - 1) // m) * m


def _pick_tile(dim, pref, quantum):
    """Largest quantum-aligned tile <= pref that divides dim, else full dim."""
    if dim <= pref:
        return dim
    t = (pref // quantum) * quantum
    while t >= quantum:
        if dim % t == 0:
            return t
        t -= quantum
    return dim


def _pad_seq_len(S, B):
    """Pad S so the flattened row dim (B*S_pad) tiles into full 256-row slabs."""
    s8 = _round_up(S, 8)
    if B * s8 < 256:
        return s8
    q = 256 // math.gcd(B, 256)
    return _round_up(S, q)


def _bytes(dt):
    return np.dtype(dt).itemsize


def _compiler_params(dims, vmem_estimate):
    kw = {}
    if vmem_estimate > _DEFAULT_VMEM_LIMIT:
        kw["vmem_limit_bytes"] = int(min(vmem_estimate, _MAX_VMEM_LIMIT))
    return pltpu.CompilerParams(dimension_semantics=dims, **kw)


# ----------------------------- Pallas kernels -----------------------------

def _linear_kernel(x_ref, w_ref, b_ref, o_ref):
    # o = x @ w + b   (bf16 MXU operands, fp32 accumulation / epilogue)
    acc = jnp.dot(x_ref[...].astype(jnp.bfloat16), w_ref[...],
                  preferred_element_type=jnp.float32)
    o_ref[...] = (acc + b_ref[...]).astype(o_ref.dtype)


def _ln_linear_kernel(x_ref, g_ref, b_ref, w_ref, wb_ref, o_ref, *, gelu):
    # o = [GELU](LayerNorm(x) @ w + wb) ; LN stats + epilogue in fp32.
    x = x_ref[...].astype(jnp.float32)
    mu = jnp.mean(x, axis=-1, keepdims=True)
    var = jnp.mean((x - mu) ** 2, axis=-1, keepdims=True)
    y = (x - mu) * lax.rsqrt(var + _LN_EPS)
    y = y * g_ref[...] + b_ref[...]
    acc = jnp.dot(y.astype(jnp.bfloat16), w_ref[...],
                  preferred_element_type=jnp.float32) + wb_ref[...]
    if gelu:
        # exact erf-based GELU to match PyTorch nn.GELU default
        acc = 0.5 * acc * (1.0 + lax.erf(acc * _INV_SQRT2))
    o_ref[...] = acc.astype(o_ref.dtype)


def _linear_residual_ws_kernel(x_ref, w_ref, b_ref, r_ref, o_ref):
    # o = x @ w + b + residual   (weight fully VMEM-resident, no K tiling)
    acc = jnp.dot(x_ref[...].astype(jnp.bfloat16), w_ref[...],
                  preferred_element_type=jnp.float32)
    o_ref[...] = (acc + b_ref[...] + r_ref[...]).astype(o_ref.dtype)


def _linear_residual_acc_kernel(x_ref, w_ref, b_ref, r_ref, o_ref, acc_ref):
    # Fallback for very large K*N: K-tiled fp32 accumulator (pattern P3).
    @pl.when(pl.program_id(2) == 0)
    def _():
        acc_ref[...] = jnp.zeros_like(acc_ref)

    acc_ref[...] += jnp.dot(x_ref[...].astype(jnp.bfloat16), w_ref[...],
                            preferred_element_type=jnp.float32)

    @pl.when(pl.program_id(2) == pl.num_programs(2) - 1)
    def _():
        o_ref[...] = (acc_ref[...] + b_ref[...] + r_ref[...]).astype(o_ref.dtype)


def _attention_kernel(q_ref, kv_ref, o_ref, *, nh, hd, s_actual, scale):
    # One (batch, q-tile) per grid step.  The K/V block (full padded sequence)
    # keeps a constant block index along the q axis so it stays VMEM-resident
    # across the q tiles of a batch element.  Softmax in fp32, EUP reciprocal,
    # lane-dense (tq, E) output store.  Padded key rows are masked out.
    E = nh * hd
    skv = kv_ref.shape[0]
    masked = skv != s_actual
    if masked:
        key_mask = lax.broadcasted_iota(jnp.int32, (1, skv), 1) < s_actual
    outs = []
    # TODO(synk): replace the per-head slices with a head-batched dot_general
    #             and a flash-style online-softmax accumulator for very long S.
    for h in range(nh):
        q = q_ref[:, pl.ds(h * hd, hd)].astype(jnp.bfloat16)
        k = kv_ref[:, pl.ds(E + h * hd, hd)].astype(jnp.bfloat16)
        v = kv_ref[:, pl.ds(2 * E + h * hd, hd)].astype(jnp.bfloat16)
        s = lax.dot_general(q, k, (((1,), (1,)), ((), ())),
                            preferred_element_type=jnp.float32) * scale
        if masked:
            s = jnp.where(key_mask, s, -1e30)
        s = s - jnp.max(s, axis=-1, keepdims=True)
        p = jnp.exp(s)
        p = p * pl.reciprocal(jnp.sum(p, axis=-1, keepdims=True), approx=True)
        outs.append(jnp.dot(p.astype(jnp.bfloat16), v,
                            preferred_element_type=jnp.float32))
    out = outs[0] if nh == 1 else jnp.concatenate(outs, axis=-1)
    o_ref[...] = out.astype(o_ref.dtype)


# ----------------------------- Pallas wrappers -----------------------------

def linear(x, w, b, *, out_dtype=None):
    M, K = x.shape
    N = w.shape[1]
    out_dtype = out_dtype or x.dtype
    tm = _pick_tile(M, 256, 8)   # v5e/v6e (128 MiB VMEM) could raise pref to 512
    b2 = b.reshape(1, N)
    w_bytes = K * N * _bytes(w.dtype)
    if w_bytes <= _WEIGHT_RESIDENT_BYTES:
        est = 2 * (tm * K * _bytes(x.dtype) + w_bytes
                   + tm * N * _bytes(out_dtype)) + 4 * N * 4
        return pl.pallas_call(
            _linear_kernel,
            out_shape=jax.ShapeDtypeStruct((M, N), out_dtype),
            grid=(M // tm,),
            in_specs=[
                pl.BlockSpec((tm, K), lambda i: (i, 0)),
                pl.BlockSpec((K, N), lambda i: (0, 0)),   # weight DMA'd once
                pl.BlockSpec((1, N), lambda i: (0, 0)),
            ],
            out_specs=pl.BlockSpec((tm, N), lambda i: (i, 0)),
            compiler_params=_compiler_params(("parallel",), est),
        )(x, w, b2)
    # Fallback: column-tiled; column axis outermost so the weight tile's block
    # index changes slowest (stays resident across all row tiles).
    tn = _pick_tile(N, 512, 128)
    est = 2 * (tm * K * _bytes(x.dtype) + K * tn * _bytes(w.dtype)
               + tm * tn * _bytes(out_dtype)) + 4 * tn * 4
    return pl.pallas_call(
        _linear_kernel,
        out_shape=jax.ShapeDtypeStruct((M, N), out_dtype),
        grid=(N // tn, M // tm),
        in_specs=[
            pl.BlockSpec((tm, K), lambda j, i: (i, 0)),
            pl.BlockSpec((K, tn), lambda j, i: (0, j)),
            pl.BlockSpec((1, tn), lambda j, i: (0, j)),
        ],
        out_specs=pl.BlockSpec((tm, tn), lambda j, i: (i, j)),
        compiler_params=_compiler_params(("parallel", "parallel"), est),
    )(x, w, b2)


def ln_linear(x, gamma, beta, w, wb, *, gelu=False, out_dtype=None):
    M, K = x.shape
    N = w.shape[1]
    out_dtype = out_dtype or x.dtype
    tm = _pick_tile(M, 256, 8)
    g2, bt2, wb2 = gamma.reshape(1, K), beta.reshape(1, K), wb.reshape(1, N)
    kern = functools.partial(_ln_linear_kernel, gelu=gelu)
    w_bytes = K * N * _bytes(w.dtype)
    if w_bytes <= _WEIGHT_RESIDENT_BYTES:
        # Single column tile => LayerNorm is computed exactly once per row tile.
        est = 2 * (tm * K * _bytes(x.dtype) + w_bytes
                   + tm * N * _bytes(out_dtype)) + 8 * K * 4 + 4 * N * 4
        return pl.pallas_call(
            kern,
            out_shape=jax.ShapeDtypeStruct((M, N), out_dtype),
            grid=(M // tm,),
            in_specs=[
                pl.BlockSpec((tm, K), lambda i: (i, 0)),
                pl.BlockSpec((1, K), lambda i: (0, 0)),
                pl.BlockSpec((1, K), lambda i: (0, 0)),
                pl.BlockSpec((K, N), lambda i: (0, 0)),   # weight DMA'd once
                pl.BlockSpec((1, N), lambda i: (0, 0)),
            ],
            out_specs=pl.BlockSpec((tm, N), lambda i: (i, 0)),
            compiler_params=_compiler_params(("parallel",), est),
        )(x, g2, bt2, w, wb2)
    # Fallback: column-tiled, column axis outermost (weight resident per column
    # tile).  TODO(synk): cache the normalized bf16 x-tile in VMEM scratch to
    # avoid recomputing LN per column tile on this (oversized-weight) path.
    tn = _pick_tile(N, 512, 128)
    est = 2 * (tm * K * _bytes(x.dtype) + K * tn * _bytes(w.dtype)
               + tm * tn * _bytes(out_dtype)) + 8 * K * 4 + 4 * tn * 4
    return pl.pallas_call(
        kern,
        out_shape=jax.ShapeDtypeStruct((M, N), out_dtype),
        grid=(N // tn, M // tm),
        in_specs=[
            pl.BlockSpec((tm, K), lambda j, i: (i, 0)),
            pl.BlockSpec((1, K), lambda j, i: (0, 0)),
            pl.BlockSpec((1, K), lambda j, i: (0, 0)),
            pl.BlockSpec((K, tn), lambda j, i: (0, j)),
            pl.BlockSpec((1, tn), lambda j, i: (0, j)),
        ],
        out_specs=pl.BlockSpec((tm, tn), lambda j, i: (i, j)),
        compiler_params=_compiler_params(("parallel", "parallel"), est),
    )(x, g2, bt2, w, wb2)


def linear_residual(x, w, b, residual):
    M, K = x.shape
    N = w.shape[1]
    out_dtype = residual.dtype
    tm = _pick_tile(M, 256, 8)
    b2 = b.reshape(1, N)
    w_bytes = K * N * _bytes(w.dtype)
    if w_bytes <= _WEIGHT_RESIDENT_BYTES:
        est = 2 * (tm * K * _bytes(x.dtype) + w_bytes + 2 * tm * N * 4) + 4 * N * 4
        return pl.pallas_call(
            _linear_residual_ws_kernel,
            out_shape=jax.ShapeDtypeStruct((M, N), out_dtype),
            grid=(M // tm,),
            in_specs=[
                pl.BlockSpec((tm, K), lambda i: (i, 0)),
                pl.BlockSpec((K, N), lambda i: (0, 0)),   # weight DMA'd once
                pl.BlockSpec((1, N), lambda i: (0, 0)),
                pl.BlockSpec((tm, N), lambda i: (i, 0)),
            ],
            out_specs=pl.BlockSpec((tm, N), lambda i: (i, 0)),
            input_output_aliases={3: 0},   # update residual stream in place
            compiler_params=_compiler_params(("parallel",), est),
        )(x, w, b2, residual)
    # Fallback for very large K*N: K-tiled accumulator (pattern P3).
    tn = _pick_tile(N, 512, 128)
    tk = _pick_tile(K, 512, 128)
    est = 2 * (tm * tk * _bytes(x.dtype) + tk * tn * _bytes(w.dtype)
               + 2 * tm * tn * 4) + tm * tn * 4
    return pl.pallas_call(
        _linear_residual_acc_kernel,
        out_shape=jax.ShapeDtypeStruct((M, N), out_dtype),
        grid=(M // tm, N // tn, K // tk),
        in_specs=[
            pl.BlockSpec((tm, tk), lambda i, j, k: (i, k)),
            pl.BlockSpec((tk, tn), lambda i, j, k: (k, j)),
            pl.BlockSpec((1, tn), lambda i, j, k: (0, j)),
            pl.BlockSpec((tm, tn), lambda i, j, k: (i, j)),
        ],
        out_specs=pl.BlockSpec((tm, tn), lambda i, j, k: (i, j)),
        scratch_shapes=[pltpu.VMEM((tm, tn), jnp.float32)],
        input_output_aliases={3: 0},
        compiler_params=_compiler_params(
            ("parallel", "parallel", "arbitrary"), est),
    )(x, w, b2, residual)


def attention(qkv, nh, hd, s_actual, scale):
    B, S_pad, E3 = qkv.shape
    E = E3 // 3
    tq = _pick_tile(S_pad, 128, 8)
    kern = functools.partial(_attention_kernel, nh=nh, hd=hd,
                             s_actual=s_actual, scale=scale)
    est = (2 * (tq * E3 + S_pad * E3 + tq * E) * _bytes(qkv.dtype)
           + 3 * nh * tq * S_pad * 4)
    return pl.pallas_call(
        kern,
        out_shape=jax.ShapeDtypeStruct((B, S_pad, E), qkv.dtype),
        grid=(B, S_pad // tq),
        in_specs=[
            pl.BlockSpec((None, tq, E3), lambda b, qi: (b, qi, 0)),    # queries
            pl.BlockSpec((None, S_pad, E3), lambda b, qi: (b, 0, 0)),  # keys/values
        ],
        out_specs=pl.BlockSpec((None, tq, E), lambda b, qi: (b, qi, 0)),
        compiler_params=_compiler_params(("parallel", "parallel"), est),
    )(qkv, qkv)


# ----------------------------- Model forward -----------------------------

def vit_forward(x, params, cfg):
    B, C, H, W = x.shape
    p = cfg["patch_size"]
    E = cfg["embed_dim"]
    nh = cfg["num_heads"]
    hd = E // nh
    Hp, Wp = H // p, W // p
    n_patches = Hp * Wp
    S = n_patches + 1
    S_pad = _pad_seq_len(S, B)

    # Patch embedding: conv(k=p, stride=p) == per-patch matmul.
    patches = x.reshape(B, C, Hp, p, Wp, p)
    patches = jnp.transpose(patches, (0, 2, 4, 1, 3, 5)).reshape(
        B * n_patches, C * p * p)
    tok = linear(patches, params["proj_w"], params["proj_b"])
    tok = tok.reshape(B, n_patches, E)

    cls = jnp.broadcast_to(params["cls_token"], (B, 1, E))
    h = jnp.concatenate([cls, tok], axis=1) + params["pos_embedding"]  # (B,S,E)
    if S_pad != S:
        # Pad rows once; padded key rows are masked inside attention and padded
        # query rows never feed the head (only the CLS row is read at the end).
        h = jnp.concatenate([h, jnp.zeros((B, S_pad - S, E), h.dtype)], axis=1)
    h = h.reshape(B * S_pad, E)            # fp32 residual stream

    scale = 1.0 / math.sqrt(hd)

    for lyr in params["layers"]:
        # --- attention block:  h += out_proj(attn(LN1(h))) ---
        qkv = ln_linear(h, lyr["ln1_g"], lyr["ln1_b"],
                        lyr["in_proj_w_t"], lyr["in_proj_b"],
                        out_dtype=jnp.bfloat16)                      # (B*S_pad, 3E)
        a = attention(qkv.reshape(B, S_pad, 3 * E), nh, hd, S, scale)  # bf16
        h = linear_residual(a.reshape(B * S_pad, E),
                            lyr["out_w_t"], lyr["out_b"], h)          # fp32

        # --- MLP block:  h += W2 @ GELU(W1 @ LN2(h)) ---  (dropout = identity)
        y = ln_linear(h, lyr["ln2_g"], lyr["ln2_b"],
                      lyr["mlp_w1_t"], lyr["mlp_b1"],
                      gelu=True, out_dtype=jnp.bfloat16)
        h = linear_residual(y, lyr["mlp_w2_t"], lyr["mlp_b2"], h)

    # Final LayerNorm + head applied only to the CLS rows (identical result to
    # normalizing all tokens then slicing, since LN is per-row).
    cls_out = h.reshape(B, S_pad, E)[:, 0]                             # (B, E)
    logits = ln_linear(cls_out, params["norm_g"], params["norm_b"],
                       params["head_w_t"], params["head_b"])           # (B, nc)
    return logits


# ----------------------------- Parameter init -----------------------------

def init_params(key, cfg):
    C = cfg["in_channels"]
    p = cfg["patch_size"]
    E = cfg["embed_dim"]
    hidden = int(E * cfg["mlp_dim"])
    n_patches = (cfg["img_size"] // p) ** 2
    nc = cfg["num_classes"]

    def nrm(k, shape, scl=0.02):
        return scl * jax.random.normal(k, shape, dtype=jnp.float32)

    def bf16(a):
        return a.astype(jnp.bfloat16)   # matmul weights stored bf16 for MXU

    keys = jax.random.split(key, 8 + 10 * cfg["num_layers"])
    ki = iter(keys)

    params = {
        # Conv2d(E, C, p, p) reshaped to (C*p*p, E) matmul weight.
        "proj_w": bf16(nrm(next(ki), (E, C * p * p)).T),
        "proj_b": nrm(next(ki), (E,)),
        "cls_token": nrm(next(ki), (1, 1, E)),
        "pos_embedding": nrm(next(ki), (1, n_patches + 1, E)),
        "norm_g": jnp.ones((E,), jnp.float32),
        "norm_b": jnp.zeros((E,), jnp.float32),
        # nn.Linear(E, nc): weight (nc, E) -> pass transposed.
        "head_w_t": bf16(nrm(next(ki), (nc, E)).T),
        "head_b": nrm(next(ki), (nc,)),
        "layers": [],
    }

    for _ in range(cfg["num_layers"]):
        lyr = {
            "ln1_g": jnp.ones((E,), jnp.float32),
            "ln1_b": jnp.zeros((E,), jnp.float32),
            "in_proj_w_t": bf16(nrm(next(ki), (3 * E, E)).T),   # (E, 3E)
            "in_proj_b": nrm(next(ki), (3 * E,)),
            "out_w_t": bf16(nrm(next(ki), (E, E)).T),
            "out_b": nrm(next(ki), (E,)),
            "ln2_g": jnp.ones((E,), jnp.float32),
            "ln2_b": jnp.zeros((E,), jnp.float32),
            "mlp_w1_t": bf16(nrm(next(ki), (hidden, E)).T),     # (E, hidden)
            "mlp_b1": nrm(next(ki), (hidden,)),
            "mlp_w2_t": bf16(nrm(next(ki), (E, hidden)).T),     # (hidden, E)
            "mlp_b2": nrm(next(ki), (E,)),
        }
        params["layers"].append(lyr)
    return params


# ----------------------------- Main -----------------------------

if __name__ == "__main__":
    cfg = dict(
        img_size=16,
        patch_size=4,
        in_channels=4,
        num_classes=10,
        embed_dim=32,
        num_heads=2,
        num_layers=2,
        mlp_dim=4.0,     # used as mlp_ratio, matching the PyTorch module
        dropout=0.1,     # identity at inference
    )

    key = jax.random.PRNGKey(0)
    kx, kp = jax.random.split(key)
    x = jax.random.normal(kx, (2, cfg["in_channels"], cfg["img_size"],
                               cfg["img_size"]), dtype=jnp.float32)
    params = init_params(kp, cfg)

    logits = jax.jit(functools.partial(vit_forward, cfg=cfg))(x, params)
    logits = jax.block_until_ready(logits)

    assert logits.shape == (2, cfg["num_classes"])
    assert bool(jnp.all(jnp.isfinite(logits)))
    print("KERNEL_OK")
</pallas_src>

<mosaic_0001>
module attributes {stable_mosaic.version = 11 : i64} {
  func.func @_linear_kernel(%arg0: i32, %arg1: memref<32x64xf32, #tpu.memory_space<vmem>>, %arg2: memref<64x32xbf16, #tpu.memory_space<vmem>>, %arg3: memref<1x32xf32, #tpu.memory_space<vmem>>, %arg4: memref<32x32xf32, #tpu.memory_space<vmem>>) attributes {dimension_semantics = [#tpu.dimension_semantics<parallel>], iteration_bounds = array<i64: 1>, scalar_prefetch = 0 : i64, scratch_operands = 0 : i64, tpu.core_type = #tpu.core_type<tc>, window_params = [{transform_indices = @transform_0, window_bounds = array<i64: 32, 64>}, {pipeline_mode = #tpu.pipeline_mode<synchronous>, transform_indices = @transform_1, window_bounds = array<i64: 64, 32>}, {pipeline_mode = #tpu.pipeline_mode<synchronous>, transform_indices = @transform_2, window_bounds = array<i64: 1, 32>}, {transform_indices = @transform_3, window_bounds = array<i64: 32, 32>}]} {
    %c0 = arith.constant 0 : index
    %c0_0 = arith.constant 0 : index
    %0 = vector.load %arg1[%c0, %c0_0] : memref<32x64xf32, #tpu.memory_space<vmem>>, vector<32x64xf32>
    %1 = arith.truncf %0 : vector<32x64xf32> to vector<32x64xbf16>
    %c0_1 = arith.constant 0 : index
    %c0_2 = arith.constant 0 : index
    %2 = vector.load %arg2[%c0_1, %c0_2] : memref<64x32xbf16, #tpu.memory_space<vmem>>, vector<64x32xbf16>
    %cst = arith.constant dense<0.000000e+00> : vector<32x32xf32>
    %3 = tpu.matmul %1, %2, %cst {dimension_numbers = #tpu.dot_dimension_numbers<[1], [0], [0], [1], [0, 0, 1, 1], [], []>} : vector<32x64xbf16>, vector<64x32xbf16>, vector<32x32xf32> -> vector<32x32xf32>
    %c0_3 = arith.constant 0 : index
    %c0_4 = arith.constant 0 : index
    %4 = vector.load %arg3[%c0_3, %c0_4] : memref<1x32xf32, #tpu.memory_space<vmem>>, vector<1x32xf32>
    %5 = vector.broadcast %4 : vector<1x32xf32> to vector<32x32xf32>
    %6 = arith.addf %3, %5 : vector<32x32xf32>
    %c0_5 = arith.constant 0 : index
    %c0_6 = arith.constant 0 : index
    %7 = vector.load %arg4[%c0_5, %c0_6] : memref<32x32xf32, #tpu.memory_space<vmem>>, vector<32x32xf32>
    tpu.vector_store %arg4[%c0_5, %c0_6], %6 {strides = array<i32>} : memref<32x32xf32, #tpu.memory_space<vmem>>, vector<32x32xf32>,
    return
  }
  func.func @transform_0(%arg0: i32) -> (i32, i32) {
    %c0_i32 = arith.constant 0 : i32
    %c0_i32_0 = arith.constant 0 : i32
    return %arg0, %c0_i32 : i32, i32
  }
  func.func @transform_1(%arg0: i32) -> (i32, i32) {
    %c0_i32 = arith.constant 0 : i32
    %c0_i32_0 = arith.constant 0 : i32
    %c0_i32_1 = arith.constant 0 : i32
    return %c0_i32, %c0_i32_0 : i32, i32
  }
  func.func @transform_2(%arg0: i32) -> (i32, i32) {
    %c0_i32 = arith.constant 0 : i32
    %c0_i32_0 = arith.constant 0 : i32
    %c0_i32_1 = arith.constant 0 : i32
    return %c0_i32, %c0_i32_0 : i32, i32
  }
  func.func @transform_3(%arg0: i32) -> (i32, i32) {
    %c0_i32 = arith.constant 0 : i32
    %c0_i32_0 = arith.constant 0 : i32
    return %arg0, %c0_i32 : i32, i32
  }
}

module attributes {stable_mosaic.version = 11 : i64} {
  func.func @_ln_linear_kernel(%arg0: i32, %arg1: memref<48x32xf32, #tpu.memory_space<vmem>>, %arg2: memref<1x32xf32, #tpu.memory_space<vmem>>, %arg3: memref<1x32xf32, #tpu.memory_space<vmem>>, %arg4: memref<32x96xbf16, #tpu.memory_space<vmem>>, %arg5: memref<1x96xf32, #tpu.memory_space<vmem>>, %arg6: memref<48x96xbf16, #tpu.memory_space<vmem>>) attributes {dimension_semantics = [#tpu.dimension_semantics<parallel>], iteration_bounds = array<i64: 1>, scalar_prefetch = 0 : i64, scratch_operands = 0 : i64, tpu.core_type = #tpu.core_type<tc>, window_params = [{transform_indices = @transform_0, window_bounds = array<i64: 48, 32>}, {pipeline_mode = #tpu.pipeline_mode<synchronous>, transform_indices = @transform_1, window_bounds = array<i64: 1, 32>}, {pipeline_mode = #tpu.pipeline_mode<synchronous>, transform_indices = @transform_2, window_bounds = array<i64: 1, 32>}, {pipeline_mode = #tpu.pipeline_mode<synchronous>, transform_indices = @transform_3, window_bounds = array<i64: 32, 96>}, {pipeline_mode = #tpu.pipeline_mode<synchronous>, transform_indices = @transform_4, window_bounds = array<i64: 1, 96>}, {transform_indices = @transform_5, window_bounds = array<i64: 48, 96>}]} {
    %c0 = arith.constant 0 : index
    %c0_0 = arith.constant 0 : index
    %0 = vector.load %arg1[%c0, %c0_0] : memref<48x32xf32, #tpu.memory_space<vmem>>, vector<48x32xf32>
    %cst = arith.constant dense<0.000000e+00> : vector<48xf32>
    %1 = vector.multi_reduction <add>, %0, %cst [1] : vector<48x32xf32> to vector<48xf32>
    %2 = vector.shape_cast %1 : vector<48xf32> to vector<48x1xf32>
    %cst_1 = arith.constant 3.200000e+01 : f32
    %3 = vector.broadcast %cst_1 : f32 to vector<48x1xf32>
    %4 = arith.divf %2, %3 : vector<48x1xf32>
    %5 = vector.broadcast %4 : vector<48x1xf32> to vector<48x32xf32>
    %6 = arith.subf %0, %5 : vector<48x32xf32>
    %7 = arith.mulf %6, %6 : vector<48x32xf32>
    %cst_2 = arith.constant dense<0.000000e+00> : vector<48xf32>
    %8 = vector.multi_reduction <add>, %7, %cst_2 [1] : vector<48x32xf32> to vector<48xf32>
    %9 = vector.shape_cast %8 : vector<48xf32> to vector<48x1xf32>
    %cst_3 = arith.constant 3.200000e+01 : f32
    %10 = vector.broadcast %cst_3 : f32 to vector<48x1xf32>
    %11 = arith.divf %9, %10 : vector<48x1xf32>
    %12 = vector.broadcast %4 : vector<48x1xf32> to vector<48x32xf32>
    %13 = arith.subf %0, %12 : vector<48x32xf32>
    %cst_4 = arith.constant 9.99999974E-6 : f32
    %14 = vector.broadcast %cst_4 : f32 to vector<48x1xf32>
    %15 = arith.addf %11, %14 : vector<48x1xf32>
    %16 = math.rsqrt %15 : vector<48x1xf32>
    %17 = vector.broadcast %16 : vector<48x1xf32> to vector<48x32xf32>
    %18 = arith.mulf %13, %17 : vector<48x32xf32>
    %c0_5 = arith.constant 0 : index
    %c0_6 = arith.constant 0 : index
    %19 = vector.load %arg2[%c0_5, %c0_6] : memref<1x32xf32, #tpu.memory_space<vmem>>, vector<1x32xf32>
    %20 = vector.broadcast %19 : vector<1x32xf32> to vector<48x32xf32>
    %21 = arith.mulf %18, %20 : vector<48x32xf32>
    %c0_7 = arith.constant 0 : index
    %c0_8 = arith.constant 0 : index
    %22 = vector.load %arg3[%c0_7, %c0_8] : memref<1x32xf32, #tpu.memory_space<vmem>>, vector<1x32xf32>
    %23 = vector.broadcast %22 : vector<1x32xf32> to vector<48x32xf32>
    %24 = arith.addf %21, %23 : vector<48x32xf32>
    %25 = arith.truncf %24 : vector<48x32xf32> to vector<48x32xbf16>
    %c0_9 = arith.constant 0 : index
    %c0_10 = arith.constant 0 : index
    %26 = vector.load %arg4[%c0_9, %c0_10] : memref<32x96xbf16, #tpu.memory_space<vmem>>, vector<32x96xbf16>
    %cst_11 = arith.constant dense<0.000000e+00> : vector<48x96xf32>
    %27 = tpu.matmul %25, %26, %cst_11 {dimension_numbers = #tpu.dot_dimension_numbers<[1], [0], [0], [1], [0, 0, 1, 1], [], []>} : vector<48x32xbf16>, vector<32x96xbf16>, vector<48x96xf32> -> vector<48x96xf32>
    %c0_12 = arith.constant 0 : index
    %c0_13 = arith.constant 0 : index
    %28 = vector.load %arg5[%c0_12, %c0_13] : memref<1x96xf32, #tpu.memory_space<vmem>>, vector<1x96xf32>
    %29 = vector.broadcast %28 : vector<1x96xf32> to vector<48x96xf32>
    %30 = arith.addf %27, %29 : vector<48x96xf32>
    %31 = arith.truncf %30 : vector<48x96xf32> to vector<48x96xbf16>
    %c0_14 = arith.constant 0 : index
    %c0_15 = arith.constant 0 : index
    %32 = vector.load %arg6[%c0_14, %c0_15] : memref<48x96xbf16, #tpu.memory_space<vmem>>, vector<48x96xbf16>
    tpu.vector_store %arg6[%c0_14, %c0_15], %31 {strides = array<i32>} : memref<48x96xbf16, #tpu.memory_space<vmem>>, vector<48x96xbf16>,
    return
  }
  func.func @transform_0(%arg0: i32) -> (i32, i32) {
    %c0_i32 = arith.constant 0 : i32
    %c0_i32_0 = arith.constant 0 : i32
    return %arg0, %c0_i32 : i32, i32
  }
  func.func @transform_1(%arg0: i32) -> (i32, i32) {
    %c0_i32 = arith.constant 0 : i32
    %c0_i32_0 = arith.constant 0 : i32
    %c0_i32_1 = arith.constant 0 : i32
    return %c0_i32, %c0_i32_0 : i32, i32
  }
  func.func @transform_2(%arg0: i32) -> (i32, i32) {
    %c0_i32 = arith.constant 0 : i32
    %c0_i32_0 = arith.constant 0 : i32
    %c0_i32_1 = arith.constant 0 : i32
    return %c0_i32, %c0_i32_0 : i32, i32
  }
  func.func @transform_3(%arg0: i32) -> (i32, i32) {
    %c0_i32 = arith.constant 0 : i32
    %c0_i32_0 = arith.constant 0 : i32
    %c0_i32_1 = arith.constant 0 : i32
    return %c0_i32, %c0_i32_0 : i32, i32
  }
  func.func @transform_4(%arg0: i32) -> (i32, i32) {
    %c0_i32 = arith.constant 0 : i32
    %c0_i32_0 = arith.constant 0 : i32
    %c0_i32_1 = arith.constant 0 : i32
    return %c0_i32, %c0_i32_0 : i32, i32
  }
  func.func @transform_5(%arg0: i32) -> (i32, i32) {
    %c0_i32 = arith.constant 0 : i32
    %c0_i32_0 = arith.constant 0 : i32
    return %arg0, %c0_i32 : i32, i32
  }
}

module attributes {stable_mosaic.version = 11 : i64} {
  func.func @_attention_kernel(%arg0: i32, %arg1: i32, %arg2: memref<1x24x96xbf16, #tpu.memory_space<vmem>>, %arg3: memref<1x24x96xbf16, #tpu.memory_space<vmem>>, %arg4: memref<1x24x32xbf16, #tpu.memory_space<vmem>>) attributes {dimension_semantics = [#tpu.dimension_semantics<parallel>, #tpu.dimension_semantics<parallel>], iteration_bounds = array<i64: 2, 1>, scalar_prefetch = 0 : i64, scratch_operands = 0 : i64, tpu.core_type = #tpu.core_type<tc>, window_params = [{transform_indices = @transform_0, window_bounds = array<i64: 1, 24, 96>}, {transform_indices = @transform_1, window_bounds = array<i64: 1, 24, 96>}, {transform_indices = @transform_2, window_bounds = array<i64: 1, 24, 32>}]} {
    %0 = tpu.iota {dimensions = array<i32: 1>} : vector<1x24xi32>
    %c17_i32 = arith.constant 17 : i32
    %1 = vector.broadcast %c17_i32 : i32 to vector<1x24xi32>
    %2 = arith.cmpi slt, %0, %1 : vector<1x24xi32>
    %c0 = arith.constant 0 : index
    %c0_0 = arith.constant 0 : index
    %c0_1 = arith.constant 0 : index
    %3 = vector.load %arg2[%c0, %c0_0, %c0_1] : memref<1x24x96xbf16, #tpu.memory_space<vmem>>, vector<1x24x16xbf16>
    %4 = vector.shape_cast %3 : vector<1x24x16xbf16> to vector<24x16xbf16>
    %c0_2 = arith.constant 0 : index
    %c0_3 = arith.constant 0 : index
    %c32 = arith.constant 32 : index
    %5 = vector.load %arg3[%c0_2, %c0_3, %c32] : memref<1x24x96xbf16, #tpu.memory_space<vmem>>, vector<1x24x16xbf16>
    %6 = vector.shape_cast %5 : vector<1x24x16xbf16> to vector<24x16xbf16>
    %c0_4 = arith.constant 0 : index
    %c0_5 = arith.constant 0 : index
    %c64 = arith.constant 64 : index
    %7 = vector.load %arg3[%c0_4, %c0_5, %c64] : memref<1x24x96xbf16, #tpu.memory_space<vmem>>, vector<1x24x16xbf16>
    %8 = vector.shape_cast %7 : vector<1x24x16xbf16> to vector<24x16xbf16>
    %cst = arith.constant dense<0.000000e+00> : vector<24x24xf32>
    %9 = tpu.matmul %4, %6, %cst {dimension_numbers = #tpu.dot_dimension_numbers<[1], [1], [0], [0], [0, 0, 1, 0], [], []>} : vector<24x16xbf16>, vector<24x16xbf16>, vector<24x24xf32> -> vector<24x24xf32>
    %cst_6 = arith.constant 2.500000e-01 : f32
    %10 = vector.broadcast %cst_6 : f32 to vector<24x24xf32>
    %11 = arith.mulf %9, %10 : vector<24x24xf32>
    %cst_7 = arith.constant -1.000000e+30 : f32
    %12 = vector.shape_cast %2 : vector<1x24xi1> to vector<1x24xi1>
    %13 = vector.broadcast %12 : vector<1x24xi1> to vector<24x24xi1>
    %14 = vector.broadcast %cst_7 : f32 to vector<24x24xf32>
    %15 = arith.select %13, %11, %14 : vector<24x24xi1>, vector<24x24xf32>
    %cst_8 = arith.constant dense<0xFF800000> : vector<24xf32>
    %16 = vector.multi_reduction <maximumf>, %15, %cst_8 [1] : vector<24x24xf32> to vector<24xf32>
    %17 = vector.shape_cast %16 : vector<24xf32> to vector<24x1xf32>
    %18 = vector.broadcast %17 : vector<24x1xf32> to vector<24x24xf32>
    %19 = arith.subf %15, %18 : vector<24x24xf32>
    %20 = math.exp %19 : vector<24x24xf32>
    %cst_9 = arith.constant dense<0.000000e+00> : vector<24xf32>
    %21 = vector.multi_reduction <add>, %20, %cst_9 [1] : vector<24x24xf32> to vector<24xf32>
    %22 = vector.shape_cast %21 : vector<24xf32> to vector<24x1xf32>
    %23 = tpu.reciprocal %22 {approx = true} : vector<24x1xf32> -> vector<24x1xf32>
    %24 = vector.broadcast %23 : vector<24x1xf32> to vector<24x24xf32>
    %25 = arith.mulf %20, %24 : vector<24x24xf32>
    %26 = arith.truncf %25 : vector<24x24xf32> to vector<24x24xbf16>
    %cst_10 = arith.constant dense<0.000000e+00> : vector<24x16xf32>
    %27 = tpu.matmul %26, %8, %cst_10 {dimension_numbers = #tpu.dot_dimension_numbers<[1], [0], [0], [1], [0, 0, 1, 1], [], []>} : vector<24x24xbf16>, vector<24x16xbf16>, vector<24x16xf32> -> vector<24x16xf32>
    %c0_11 = arith.constant 0 : index
    %c0_12 = arith.constant 0 : index
    %c16 = arith.constant 16 : index
    %28 = vector.load %arg2[%c0_11, %c0_12, %c16] : memref<1x24x96xbf16, #tpu.memory_space<vmem>>, vector<1x24x16xbf16>
    %29 = vector.shape_cast %28 : vector<1x24x16xbf16> to vector<24x16xbf16>
    %c0_13 = arith.constant 0 : index
    %c0_14 = arith.constant 0 : index
    %c48 = arith.constant 48 : index
    %30 = vector.load %arg3[%c0_13, %c0_14, %c48] : memref<1x24x96xbf16, #tpu.memory_space<vmem>>, vector<1x24x16xbf16>
    %31 = vector.shape_cast %30 : vector<1x24x16xbf16> to vector<24x16xbf16>
    %c0_15 = arith.constant 0 : index
    %c0_16 = arith.constant 0 : index
    %c80 = arith.constant 80 : index
    %32 = vector.load %arg3[%c0_15, %c0_16, %c80] : memref<1x24x96xbf16, #tpu.memory_space<vmem>>, vector<1x24x16xbf16>
    %33 = vector.shape_cast %32 : vector<1x24x16xbf16> to vector<24x16xbf16>
    %cst_17 = arith.constant dense<0.000000e+00> : vector<24x24xf32>
    %34 = tpu.matmul %29, %31, %cst_17 {dimension_numbers = #tpu.dot_dimension_numbers<[1], [1], [0], [0], [0, 0, 1, 0], [], []>} : vector<24x16xbf16>, vector<24x16xbf16>, vector<24x24xf32> -> vector<24x24xf32>
    %cst_18 = arith.constant 2.500000e-01 : f32
    %35 = vector.broadcast %cst_18 : f32 to vector<24x24xf32>
    %36 = arith.mulf %34, %35 : vector<24x24xf32>
    %cst_19 = arith.constant -1.000000e+30 : f32
    %37 = vector.shape_cast %2 : vector<1x24xi1> to vector<1x24xi1>
    %38 = vector.broadcast %37 : vector<1x24xi1> to vector<24x24xi1>
    %39 = vector.broadcast %cst_19 : f32 to vector<24x24xf32>
    %40 = arith.select %38, %36, %39 : vector<24x24xi1>, vector<24x24xf32>
    %cst_20 = arith.constant dense<0xFF800000> : vector<24xf32>
    %41 = vector.multi_reduction <maximumf>, %40, %cst_20 [1] : vector<24x24xf32> to vector<24xf32>
    %42 = vector.shape_cast %41 : vector<24xf32> to vector<24x1xf32>
    %43 = vector.broadcast %42 : vector<24x1xf32> to vector<24x24xf32>
    %44 = arith.subf %40, %43 : vector<24x24xf32>
    %45 = math.exp %44 : vector<24x24xf32>
    %cst_21 = arith.constant dense<0.000000e+00> : vector<24xf32>
    %46 = vector.multi_reduction <add>, %45, %cst_21 [1] : vector<24x24xf32> to vector<24xf32>
    %47 = vector.shape_cast %46 : vector<24xf32> to vector<24x1xf32>
    %48 = tpu.reciprocal %47 {approx = true} : vector<24x1xf32> -> vector<24x1xf32>
    %49 = vector.broadcast %48 : vector<24x1xf32> to vector<24x24xf32>
    %50 = arith.mulf %45, %49 : vector<24x24xf32>
    %51 = arith.truncf %50 : vector<24x24xf32> to vector<24x24xbf16>
    %cst_22 = arith.constant dense<0.000000e+00> : vector<24x16xf32>
    %52 = tpu.matmul %51, %33, %cst_22 {dimension_numbers = #tpu.dot_dimension_numbers<[1], [0], [0], [1], [0, 0, 1, 1], [], []>} : vector<24x24xbf16>, vector<24x16xbf16>, vector<24x16xf32> -> vector<24x16xf32>
    %53 = tpu.concatenate %27, %52 in 1 : vector<24x16xf32>, vector<24x16xf32> -> vector<24x32xf32>
    %54 = arith.truncf %53 : vector<24x32xf32> to vector<24x32xbf16>
    %c0_23 = arith.constant 0 : index
    %c0_24 = arith.constant 0 : index
    %c0_25 = arith.constant 0 : index
    %55 = vector.load %arg4[%c0_23, %c0_24, %c0_25] : memref<1x24x32xbf16, #tpu.memory_space<vmem>>, vector<1x24x32xbf16>
    %56 = vector.shape_cast %55 : vector<1x24x32xbf16> to vector<24x32xbf16>
    %57 = vector.shape_cast %54 : vector<24x32xbf16> to vector<1x24x32xbf16>
    tpu.vector_store %arg4[%c0_23, %c0_24, %c0_25], %57 {strides = array<i32>} : memref<1x24x32xbf16, #tpu.memory_space<vmem>>, vector<1x24x32xbf16>,
    return
  }
  func.func @transform_0(%arg0: i32, %arg1: i32) -> (i32, i32, i32) {
    %c0_i32 = arith.constant 0 : i32
    %c0_i32_0 = arith.constant 0 : i32
    return %arg0, %arg1, %c0_i32 : i32, i32, i32
  }
  func.func @transform_1(%arg0: i32, %arg1: i32) -> (i32, i32, i32) {
    %c0_i32 = arith.constant 0 : i32
    %c0_i32_0 = arith.constant 0 : i32
    %c0_i32_1 = arith.constant 0 : i32
    return %arg0, %c0_i32, %c0_i32_0 : i32, i32, i32
  }
  func.func @transform_2(%arg0: i32, %arg1: i32) -> (i32, i32, i32) {
    %c0_i32 = arith.constant 0 : i32
    %c0_i32_0 = arith.constant 0 : i32
    return %arg0, %arg1, %c0_i32 : i32, i32, i32
  }
}

module attributes {stable_mosaic.version = 11 : i64} {
  func.func @_linear_residual_ws_kernel(%arg0: i32, %arg1: memref<48x32xbf16, #tpu.memory_space<vmem>>, %arg2: memref<32x32xbf16, #tpu.memory_space<vmem>>, %arg3: memref<1x32xf32, #tpu.memory_space<vmem>>, %arg4: memref<48x32xf32, #tpu.memory_space<vmem>>, %arg5: memref<48x32xf32, #tpu.memory_space<vmem>>) attributes {dimension_semantics = [#tpu.dimension_semantics<parallel>], iteration_bounds = array<i64: 1>, scalar_prefetch = 0 : i64, scratch_operands = 0 : i64, tpu.core_type = #tpu.core_type<tc>, window_params = [{transform_indices = @transform_0, window_bounds = array<i64: 48, 32>}, {pipeline_mode = #tpu.pipeline_mode<synchronous>, transform_indices = @transform_1, window_bounds = array<i64: 32, 32>}, {pipeline_mode = #tpu.pipeline_mode<synchronous>, transform_indices = @transform_2, window_bounds = array<i64: 1, 32>}, {transform_indices = @transform_3, window_bounds = array<i64: 48, 32>}, {transform_indices = @transform_4, window_bounds = array<i64: 48, 32>}]} {
    %c0 = arith.constant 0 : index
    %c0_0 = arith.constant 0 : index
    %0 = vector.load %arg1[%c0, %c0_0] : memref<48x32xbf16, #tpu.memory_space<vmem>>, vector<48x32xbf16>
    %c0_1 = arith.constant 0 : index
    %c0_2 = arith.constant 0 : index
    %1 = vector.load %arg2[%c0_1, %c0_2] : memref<32x32xbf16, #tpu.memory_space<vmem>>, vector<32x32xbf16>
    %cst = arith.constant dense<0.000000e+00> : vector<48x32xf32>
    %2 = tpu.matmul %0, %1, %cst {dimension_numbers = #tpu.dot_dimension_numbers<[1], [0], [0], [1], [0, 0, 1, 1], [], []>} : vector<48x32xbf16>, vector<32x32xbf16>, vector<48x32xf32> -> vector<48x32xf32>
    %c0_3 = arith.constant 0 : index
    %c0_4 = arith.constant 0 : index
    %3 = vector.load %arg3[%c0_3, %c0_4] : memref<1x32xf32, #tpu.memory_space<vmem>>, vector<1x32xf32>
    %4 = vector.broadcast %3 : vector<1x32xf32> to vector<48x32xf32>
    %5 = arith.addf %2, %4 : vector<48x32xf32>
    %c0_5 = arith.constant 0 : index
    %c0_6 = arith.constant 0 : index
    %6 = vector.load %arg4[%c0_5, %c0_6] : memref<48x32xf32, #tpu.memory_space<vmem>>, vector<48x32xf32>
    %7 = arith.addf %5, %6 : vector<48x32xf32>
    %c0_7 = arith.constant 0 : index
    %c0_8 = arith.constant 0 : index
    %8 = vector.load %arg5[%c0_7, %c0_8] : memref<48x32xf32, #tpu.memory_space<vmem>>, vector<48x32xf32>
    tpu.vector_store %arg5[%c0_7, %c0_8], %7 {strides = array<i32>} : memref<48x32xf32, #tpu.memory_space<vmem>>, vector<48x32xf32>,
    return
  }
  func.func @transform_0(%arg0: i32) -> (i32, i32) {
    %c0_i32 = arith.constant 0 : i32
    %c0_i32_0 = arith.constant 0 : i32
    return %arg0, %c0_i32 : i32, i32
  }
  func.func @transform_1(%arg0: i32) -> (i32, i32) {
    %c0_i32 = arith.constant 0 : i32
    %c0_i32_0 = arith.constant 0 : i32
    %c0_i32_1 = arith.constant 0 : i32
    return %c0_i32, %c0_i32_0 : i32, i32
  }
  func.func @transform_2(%arg0: i32) -> (i32, i32) {
    %c0_i32 = arith.constant 0 : i32
    %c0_i32_0 = arith.constant 0 : i32
    %c0_i32_1 = arith.constant 0 : i32
    return %c0_i32, %c0_i32_0 : i32, i32
  }
  func.func @transform_3(%arg0: i32) -> (i32, i32) {
    %c0_i32 = arith.constant 0 : i32
    %c0_i32_0 = arith.constant 0 : i32
    return %arg0, %c0_i32 : i32, i32
  }
  func.func @transform_4(%arg0: i32) -> (i32, i32) {
    %c0_i32 = arith.constant 0 : i32
    %c0_i32_0 = arith.constant 0 : i32
    return %arg0, %c0_i32 : i32, i32
  }
}

module attributes {stable_mosaic.version = 11 : i64} {
  func.func @_ln_linear_kernel(%arg0: i32, %arg1: memref<48x32xf32, #tpu.memory_space<vmem>>, %arg2: memref<1x32xf32, #tpu.memory_space<vmem>>, %arg3: memref<1x32xf32, #tpu.memory_space<vmem>>, %arg4: memref<32x128xbf16, #tpu.memory_space<vmem>>, %arg5: memref<1x128xf32, #tpu.memory_space<vmem>>, %arg6: memref<48x128xbf16, #tpu.memory_space<vmem>>) attributes {dimension_semantics = [#tpu.dimension_semantics<parallel>], iteration_bounds = array<i64: 1>, scalar_prefetch = 0 : i64, scratch_operands = 0 : i64, tpu.core_type = #tpu.core_type<tc>, window_params = [{transform_indices = @transform_0, window_bounds = array<i64: 48, 32>}, {pipeline_mode = #tpu.pipeline_mode<synchronous>, transform_indices = @transform_1, window_bounds = array<i64: 1, 32>}, {pipeline_mode = #tpu.pipeline_mode<synchronous>, transform_indices = @transform_2, window_bounds = array<i64: 1, 32>}, {pipeline_mode = #tpu.pipeline_mode<synchronous>, transform_indices = @transform_3, window_bounds = array<i64: 32, 128>}, {pipeline_mode = #tpu.pipeline_mode<synchronous>, transform_indices = @transform_4, window_bounds = array<i64: 1, 128>}, {transform_indices = @transform_5, window_bounds = array<i64: 48, 128>}]} {
    %c0 = arith.constant 0 : index
    %c0_0 = arith.constant 0 : index
    %0 = vector.load %arg1[%c0, %c0_0] : memref<48x32xf32, #tpu.memory_space<vmem>>, vector<48x32xf32>
    %cst = arith.constant dense<0.000000e+00> : vector<48xf32>
    %1 = vector.multi_reduction <add>, %0, %cst [1] : vector<48x32xf32> to vector<48xf32>
    %2 = vector.shape_cast %1 : vector<48xf32> to vector<48x1xf32>
    %cst_1 = arith.constant 3.200000e+01 : f32
    %3 = vector.broadcast %cst_1 : f32 to vector<48x1xf32>
    %4 = arith.divf %2, %3 : vector<48x1xf32>
    %5 = vector.broadcast %4 : vector<48x1xf32> to vector<48x32xf32>
    %6 = arith.subf %0, %5 : vector<48x32xf32>
    %7 = arith.mulf %6, %6 : vector<48x32xf32>
    %cst_2 = arith.constant dense<0.000000e+00> : vector<48xf32>
    %8 = vector.multi_reduction <add>, %7, %cst_2 [1] : vector<48x32xf32> to vector<48xf32>
    %9 = vector.shape_cast %8 : vector<48xf32> to vector<48x1xf32>
    %cst_3 = arith.constant 3.200000e+01 : f32
    %10 = vector.broadcast %cst_3 : f32 to vector<48x1xf32>
    %11 = arith.divf %9, %10 : vector<48x1xf32>
    %12 = vector.broadcast %4 : vector<48x1xf32> to vector<48x32xf32>
    %13 = arith.subf %0, %12 : vector<48x32xf32>
    %cst_4 = arith.constant 9.99999974E-6 : f32
    %14 = vector.broadcast %cst_4 : f32 to vector<48x1xf32>
    %15 = arith.addf %11, %14 : vector<48x1xf32>
    %16 = math.rsqrt %15 : vector<48x1xf32>
    %17 = vector.broadcast %16 : vector<48x1xf32> to vector<48x32xf32>
    %18 = arith.mulf %13, %17 : vector<48x32xf32>
    %c0_5 = arith.constant 0 : index
    %c0_6 = arith.constant 0 : index
    %19 = vector.load %arg2[%c0_5, %c0_6] : memref<1x32xf32, #tpu.memory_space<vmem>>, vector<1x32xf32>
    %20 = vector.broadcast %19 : vector<1x32xf32> to vector<48x32xf32>
    %21 = arith.mulf %18, %20 : vector<48x32xf32>
    %c0_7 = arith.constant 0 : index
    %c0_8 = arith.constant 0 : index
    %22 = vector.load %arg3[%c0_7, %c0_8] : memref<1x32xf32, #tpu.memory_space<vmem>>, vector<1x32xf32>
    %23 = vector.broadcast %22 : vector<1x32xf32> to vector<48x32xf32>
    %24 = arith.addf %21, %23 : vector<48x32xf32>
    %25 = arith.truncf %24 : vector<48x32xf32> to vector<48x32xbf16>
    %c0_9 = arith.constant 0 : index
    %c0_10 = arith.constant 0 : index
    %26 = vector.load %arg4[%c0_9, %c0_10] : memref<32x128xbf16, #tpu.memory_space<vmem>>, vector<32x128xbf16>
    %cst_11 = arith.constant dense<0.000000e+00> : vector<48x128xf32>
    %27 = tpu.matmul %25, %26, %cst_11 {dimension_numbers = #tpu.dot_dimension_numbers<[1], [0], [0], [1], [0, 0, 1, 1], [], []>} : vector<48x32xbf16>, vector<32x128xbf16>, vector<48x128xf32> -> vector<48x128xf32>
    %c0_12 = arith.constant 0 : index
    %c0_13 = arith.constant 0 : index
    %28 = vector.load %arg5[%c0_12, %c0_13] : memref<1x128xf32, #tpu.memory_space<vmem>>, vector<1x128xf32>
    %29 = vector.broadcast %28 : vector<1x128xf32> to vector<48x128xf32>
    %30 = arith.addf %27, %29 : vector<48x128xf32>
    %cst_14 = arith.constant 5.000000e-01 : f32
    %31 = vector.broadcast %cst_14 : f32 to vector<48x128xf32>
    %32 = arith.mulf %31, %30 : vector<48x128xf32>
    %cst_15 = arith.constant 0.707106769 : f32
    %33 = vector.broadcast %cst_15 : f32 to vector<48x128xf32>
    %34 = arith.mulf %30, %33 : vector<48x128xf32>
    %35 = math.erf %34 : vector<48x128xf32>
    %cst_16 = arith.constant 1.000000e+00 : f32
    %36 = vector.broadcast %cst_16 : f32 to vector<48x128xf32>
    %37 = arith.addf %36, %35 : vector<48x128xf32>
    %38 = arith.mulf %32, %37 : vector<48x128xf32>
    %39 = arith.truncf %38 : vector<48x128xf32> to vector<48x128xbf16>
    %c0_17 = arith.constant 0 : index
    %c0_18 = arith.constant 0 : index
    %40 = vector.load %arg6[%c0_17, %c0_18] : memref<48x128xbf16, #tpu.memory_space<vmem>>, vector<48x128xbf16>
    tpu.vector_store %arg6[%c0_17, %c0_18], %39 {strides = array<i32>} : memref<48x128xbf16, #tpu.memory_space<vmem>>, vector<48x128xbf16>,
    return
  }
  func.func @transform_0(%arg0: i32) -> (i32, i32) {
    %c0_i32 = arith.constant 0 : i32
    %c0_i32_0 = arith.constant 0 : i32
    return %arg0, %c0_i32 : i32, i32
  }
  func.func @transform_1(%arg0: i32) -> (i32, i32) {
    %c0_i32 = arith.constant 0 : i32
    %c0_i32_0 = arith.constant 0 : i32
    %c0_i32_1 = arith.constant 0 : i32
    return %c0_i32, %c0_i32_0 : i32, i32
  }
  func.func @transform_2(%arg0: i32) -> (i32, i32) {
    %c0_i32 = arith.constant 0 : i32
    %c0_i32_0 = arith.constant 0 : i32
    %c0_i32_1 = arith.constant 0 : i32
    return %c0_i32, %c0_i32_0 : i32, i32
  }
  func.func @transform_3(%arg0: i32) -> (i32, i32) {
    %c0_i32 = arith.constant 0 : i32
    %c0_i32_0 = arith.constant 0 : i32
    %c0_i32_1 = arith.constant 0 : i32
    return %c0_i32, %c0_i32_0 : i32, i32
  }
  func.func @transform_4(%arg0: i32) -> (i32, i32) {
    %c0_i32 = arith.constant 0 : i32
    %c0_i32_0 = arith.constant 0 : i32
    %c0_i32_1 = arith.constant 0 : i32
    return %c0_i32, %c0_i32_0 : i32, i32
  }
  func.func @transform_5(%arg0: i32) -> (i32, i32) {
    %c0_i32 = arith.constant 0 : i32
    %c0_i32_0 = arith.constant 0 : i32
    return %arg0, %c0_i32 : i32, i32
  }
}

module attributes {stable_mosaic.version = 11 : i64} {
  func.func @_linear_residual_ws_kernel(%arg0: i32, %arg1: memref<48x128xbf16, #tpu.memory_space<vmem>>, %arg2: memref<128x32xbf16, #tpu.memory_space<vmem>>, %arg3: memref<1x32xf32, #tpu.memory_space<vmem>>, %arg4: memref<48x32xf32, #tpu.memory_space<vmem>>, %arg5: memref<48x32xf32, #tpu.memory_space<vmem>>) attributes {dimension_semantics = [#tpu.dimension_semantics<parallel>], iteration_bounds = array<i64: 1>, scalar_prefetch = 0 : i64, scratch_operands = 0 : i64, tpu.core_type = #tpu.core_type<tc>, window_params = [{transform_indices = @transform_0, window_bounds = array<i64: 48, 128>}, {pipeline_mode = #tpu.pipeline_mode<synchronous>, transform_indices = @transform_1, window_bounds = array<i64: 128, 32>}, {pipeline_mode = #tpu.pipeline_mode<synchronous>, transform_indices = @transform_2, window_bounds = array<i64: 1, 32>}, {transform_indices = @transform_3, window_bounds = array<i64: 48, 32>}, {transform_indices = @transform_4, window_bounds = array<i64: 48, 32>}]} {
    %c0 = arith.constant 0 : index
    %c0_0 = arith.constant 0 : index
    %0 = vector.load %arg1[%c0, %c0_0] : memref<48x128xbf16, #tpu.memory_space<vmem>>, vector<48x128xbf16>
    %c0_1 = arith.constant 0 : index
    %c0_2 = arith.constant 0 : index
    %1 = vector.load %arg2[%c0_1, %c0_2] : memref<128x32xbf16, #tpu.memory_space<vmem>>, vector<128x32xbf16>
    %cst = arith.constant dense<0.000000e+00> : vector<48x32xf32>
    %2 = tpu.matmul %0, %1, %cst {dimension_numbers = #tpu.dot_dimension_numbers<[1], [0], [0], [1], [0, 0, 1, 1], [], []>} : vector<48x128xbf16>, vector<128x32xbf16>, vector<48x32xf32> -> vector<48x32xf32>
    %c0_3 = arith.constant 0 : index
    %c0_4 = arith.constant 0 : index
    %3 = vector.load %arg3[%c0_3, %c0_4] : memref<1x32xf32, #tpu.memory_space<vmem>>, vector<1x32xf32>
    %4 = vector.broadcast %3 : vector<1x32xf32> to vector<48x32xf32>
    %5 = arith.addf %2, %4 : vector<48x32xf32>
    %c0_5 = arith.constant 0 : index
    %c0_6 = arith.constant 0 : index
    %6 = vector.load %arg4[%c0_5, %c0_6] : memref<48x32xf32, #tpu.memory_space<vmem>>, vector<48x32xf32>
    %7 = arith.addf %5, %6 : vector<48x32xf32>
    %c0_7 = arith.constant 0 : index
    %c0_8 = arith.constant 0 : index
    %8 = vector.load %arg5[%c0_7, %c0_8] : memref<48x32xf32, #tpu.memory_space<vmem>>, vector<48x32xf32>
    tpu.vector_store %arg5[%c0_7, %c0_8], %7 {strides = array<i32>} : memref<48x32xf32, #tpu.memory_space<vmem>>, vector<48x32xf32>,
    return
  }
  func.func @transform_0(%arg0: i32) -> (i32, i32) {
    %c0_i32 = arith.constant 0 : i32
    %c0_i32_0 = arith.constant 0 : i32
    return %arg0, %c0_i32 : i32, i32
  }
  func.func @transform_1(%arg0: i32) -> (i32, i32) {
    %c0_i32 = arith.constant 0 : i32
    %c0_i32_0 = arith.constant 0 : i32
    %c0_i32_1 = arith.constant 0 : i32
    return %c0_i32, %c0_i32_0 : i32, i32
  }
  func.func @transform_2(%arg0: i32) -> (i32, i32) {
    %c0_i32 = arith.constant 0 : i32
    %c0_i32_0 = arith.constant 0 : i32
    %c0_i32_1 = arith.constant 0 : i32
    return %c0_i32, %c0_i32_0 : i32, i32
  }
  func.func @transform_3(%arg0: i32) -> (i32, i32) {
    %c0_i32 = arith.constant 0 : i32
    %c0_i32_0 = arith.constant 0 : i32
    return %arg0, %c0_i32 : i32, i32
  }
  func.func @transform_4(%arg0: i32) -> (i32, i32) {
    %c0_i32 = arith.constant 0 : i32
    %c0_i32_0 = arith.constant 0 : i32
    return %arg0, %c0_i32 : i32, i32
  }
}

module attributes {stable_mosaic.version = 11 : i64} {
  func.func @_ln_linear_kernel(%arg0: i32, %arg1: memref<2x32xf32, #tpu.memory_space<vmem>>, %arg2: memref<1x32xf32, #tpu.memory_space<vmem>>, %arg3: memref<1x32xf32, #tpu.memory_space<vmem>>, %arg4: memref<32x10xbf16, #tpu.memory_space<vmem>>, %arg5: memref<1x10xf32, #tpu.memory_space<vmem>>, %arg6: memref<2x10xf32, #tpu.memory_space<vmem>>) attributes {dimension_semantics = [#tpu.dimension_semantics<parallel>], iteration_bounds = array<i64: 1>, scalar_prefetch = 0 : i64, scratch_operands = 0 : i64, tpu.core_type = #tpu.core_type<tc>, window_params = [{transform_indices = @transform_0, window_bounds = array<i64: 2, 32>}, {pipeline_mode = #tpu.pipeline_mode<synchronous>, transform_indices = @transform_1, window_bounds = array<i64: 1, 32>}, {pipeline_mode = #tpu.pipeline_mode<synchronous>, transform_indices = @transform_2, window_bounds = array<i64: 1, 32>}, {pipeline_mode = #tpu.pipeline_mode<synchronous>, transform_indices = @transform_3, window_bounds = array<i64: 32, 10>}, {pipeline_mode = #tpu.pipeline_mode<synchronous>, transform_indices = @transform_4, window_bounds = array<i64: 1, 10>}, {transform_indices = @transform_5, window_bounds = array<i64: 2, 10>}]} {
    %c0 = arith.constant 0 : index
    %c0_0 = arith.constant 0 : index
    %0 = vector.load %arg1[%c0, %c0_0] : memref<2x32xf32, #tpu.memory_space<vmem>>, vector<2x32xf32>
    %cst = arith.constant dense<0.000000e+00> : vector<2xf32>
    %1 = vector.multi_reduction <add>, %0, %cst [1] : vector<2x32xf32> to vector<2xf32>
    %2 = vector.shape_cast %1 : vector<2xf32> to vector<2x1xf32>
    %cst_1 = arith.constant 3.200000e+01 : f32
    %3 = vector.broadcast %cst_1 : f32 to vector<2x1xf32>
    %4 = arith.divf %2, %3 : vector<2x1xf32>
    %5 = vector.broadcast %4 : vector<2x1xf32> to vector<2x32xf32>
    %6 = arith.subf %0, %5 : vector<2x32xf32>
    %7 = arith.mulf %6, %6 : vector<2x32xf32>
    %cst_2 = arith.constant dense<0.000000e+00> : vector<2xf32>
    %8 = vector.multi_reduction <add>, %7, %cst_2 [1] : vector<2x32xf32> to vector<2xf32>
    %9 = vector.shape_cast %8 : vector<2xf32> to vector<2x1xf32>
    %cst_3 = arith.constant 3.200000e+01 : f32
    %10 = vector.broadcast %cst_3 : f32 to vector<2x1xf32>
    %11 = arith.divf %9, %10 : vector<2x1xf32>
    %12 = vector.broadcast %4 : vector<2x1xf32> to vector<2x32xf32>
    %13 = arith.subf %0, %12 : vector<2x32xf32>
    %cst_4 = arith.constant 9.99999974E-6 : f32
    %14 = vector.broadcast %cst_4 : f32 to vector<2x1xf32>
    %15 = arith.addf %11, %14 : vector<2x1xf32>
    %16 = math.rsqrt %15 : vector<2x1xf32>
    %17 = vector.broadcast %16 : vector<2x1xf32> to vector<2x32xf32>
    %18 = arith.mulf %13, %17 : vector<2x32xf32>
    %c0_5 = arith.constant 0 : index
    %c0_6 = arith.constant 0 : index
    %19 = vector.load %arg2[%c0_5, %c0_6] : memref<1x32xf32, #tpu.memory_space<vmem>>, vector<1x32xf32>
    %20 = vector.broadcast %19 : vector<1x32xf32> to vector<2x32xf32>
    %21 = arith.mulf %18, %20 : vector<2x32xf32>
    %c0_7 = arith.constant 0 : index
    %c0_8 = arith.constant 0 : index
    %22 = vector.load %arg3[%c0_7, %c0_8] : memref<1x32xf32, #tpu.memory_space<vmem>>, vector<1x32xf32>
    %23 = vector.broadcast %22 : vector<1x32xf32> to vector<2x32xf32>
    %24 = arith.addf %21, %23 : vector<2x32xf32>
    %25 = arith.truncf %24 : vector<2x32xf32> to vector<2x32xbf16>
    %c0_9 = arith.constant 0 : index
    %c0_10 = arith.constant 0 : index
    %26 = vector.load %arg4[%c0_9, %c0_10] : memref<32x10xbf16, #tpu.memory_space<vmem>>, vector<32x10xbf16>
    %cst_11 = arith.constant dense<0.000000e+00> : vector<2x10xf32>
    %27 = tpu.matmul %25, %26, %cst_11 {dimension_numbers = #tpu.dot_dimension_numbers<[1], [0], [0], [1], [0, 0, 1, 1], [], []>} : vector<2x32xbf16>, vector<32x10xbf16>, vector<2x10xf32> -> vector<2x10xf32>
    %c0_12 = arith.constant 0 : index
    %c0_13 = arith.constant 0 : index
    %28 = vector.load %arg5[%c0_12, %c0_13] : memref<1x10xf32, #tpu.memory_space<vmem>>, vector<1x10xf32>
    %29 = vector.broadcast %28 : vector<1x10xf32> to vector<2x10xf32>
    %30 = arith.addf %27, %29 : vector<2x10xf32>
    %c0_14 = arith.constant 0 : index
    %c0_15 = arith.constant 0 : index
    %31 = vector.load %arg6[%c0_14, %c0_15] : memref<2x10xf32, #tpu.memory_space<vmem>>, vector<2x10xf32>
    tpu.vector_store %arg6[%c0_14, %c0_15], %30 {strides = array<i32>} : memref<2x10xf32, #tpu.memory_space<vmem>>, vector<2x10xf32>,
    return
  }
  func.func @transform_0(%arg0: i32) -> (i32, i32) {
    %c0_i32 = arith.constant 0 : i32
    %c0_i32_0 = arith.constant 0 : i32
    return %arg0, %c0_i32 : i32, i32
  }
  func.func @transform_1(%arg0: i32) -> (i32, i32) {
    %c0_i32 = arith.constant 0 : i32
    %c0_i32_0 = arith.constant 0 : i32
    %c0_i32_1 = arith.constant 0 : i32
    return %c0_i32, %c0_i32_0 : i32, i32
  }
  func.func @transform_2(%arg0: i32) -> (i32, i32) {
    %c0_i32 = arith.constant 0 : i32
    %c0_i32_0 = arith.constant 0 : i32
    %c0_i32_1 = arith.constant 0 : i32
    return %c0_i32, %c0_i32_0 : i32, i32
  }
  func.func @transform_3(%arg0: i32) -> (i32, i32) {
    %c0_i32 = arith.constant 0 : i32
    %c0_i32_0 = arith.constant 0 : i32
    %c0_i32_1 = arith.constant 0 : i32
    return %c0_i32, %c0_i32_0 : i32, i32
  }
  func.func @transform_4(%arg0: i32) -> (i32, i32) {
    %c0_i32 = arith.constant 0 : i32
    %c0_i32_0 = arith.constant 0 : i32
    %c0_i32_1 = arith.constant 0 : i32
    return %c0_i32, %c0_i32_0 : i32, i32
  }
  func.func @transform_5(%arg0: i32) -> (i32, i32) {
    %c0_i32 = arith.constant 0 : i32
    %c0_i32_0 = arith.constant 0 : i32
    return %arg0, %c0_i32 : i32, i32
  }
}

</mosaic_0001>

<llo_original>
// kernel: vit_forward.14
$region0: #{vit_forward.14}
  #allocation0 [shape = 'u32[]', space=smem, size = 0x4, offset = 0x4, fixed_abs, tag = 'smem constant byte address 0x4 - core index']
  #allocation1 [shape = 'u32[144,128]{1,0:T(1,128)}', space=vmem, size = 0x12000, scoped, tag = 'internal scratch']
  %s0 = inlined_call_operand.vmem [shape: bf16[2,24,96], index: 0, kind: input, shape index: {}, may-alias: {0,1}]
  %s1 = inlined_call_operand.vmem [shape: bf16[2,24,96], index: 1, kind: input, shape index: {}, may-alias: {0,1}]
  %s2 = inlined_call_operand.vmem [shape: bf16[2,24,32], index: 2, kind: output, shape index: {}]
  %s3 = sld [smem:[#allocation0]]
  $region41: #{vit_forward.14} parent=0
    _
  %s5 = ssub.s32 1, %s3
  %s6 = scalar_select 0, %s5, %s3
  loop: start=0, step=1, limit=4
  $region2: #{vit_forward.14} parent=0 // loop_pre_header
    _
  $region3: #{vit_forward.14} parent=0 // loop_header
    %s8 = sphi 0, %s12
    %p9 = scmp.ge.s32.totalorder %s8, 4
    %s15 = sphi 0, %s27
    %s16 = sphi 0, %s23
    %s17 = sphi 0, %s15
    %s18 = sphi 0, %s16
    %s19 = sphi 0, %s17
    %s20 = sphi 0, %s18
    %s32 = sphi 0, %s34
    %s35 = sphi 0, %s32
    %s36 = sphi 0, %s35
    %s52 = sphi 0, %s36
    %s58 = sphi 0, %s60
    %s61 = sphi 0, %s58
    %s62 = sphi 0, %s61
    %s78 = sphi 0, %s62
    %s86 = sphi 0, %s88
    %s89 = sphi 0, %s86
    %s90 = sphi 0, %s89
    %s106 = sphi 0, %s90
  $region4: #{vit_forward.14} parent=0 // loop_header_branch
    %11 = sbr.rel (%p9) target = $region8
  $region5: #{vit_forward.14} parent=0 // loop_body
    %s13 = ssub.s32 %s8, 1
    %s14 = ssub.s32 %s8, 2
    %s21 = sadd.s32 1, %s16
    %p22 = scmp.ge.s32.totalorder %s21, 1
    %s23 = scalar_select %p22, 0, %s21
    %s24 = sadd.s32 1, %s15
    %s25 = scalar_select %p22, %s24, %s15
    %p26 = scmp.ge.s32.totalorder %s25, 2
    %s27 = scalar_select %p26, 0, %s25
    %s28 = ssub.s32 %s15, %s27
    %s29 = ssub.s32 %s16, %s23
    %s30 = sor.u32 %s28, %s29
    %p31 = scmp.eq.s32.totalorder %s30, 0
    %s33 = sadd.s32 %s32, 1
    %s34 = scalar_select %p31, %s32, %s33
    %p37 = pneg %p31
    %p38 = scmp.eq.s32.totalorder %s8, 1
    %p39 = por %p37, %p38
    %p40 = scmp.ne.s32.totalorder %s32, %s35
    %p41 = scmp.eq.s32.totalorder %s8, 0
    %p42 = por %p40, %p41
    %p43 = scmp.ne.s32.totalorder %s32, %s35
    %p44 = scmp.eq.s32.totalorder %s13, 1
    %p45 = por %p43, %p44
    %p46 = scmp.ne.s32.totalorder %s35, %s36
    %p47 = scmp.eq.s32.totalorder %s13, 0
    %p48 = por %p46, %p47
    %p49 = scmp.ne.s32.totalorder %s35, %s36
    %p50 = scmp.eq.s32.totalorder %s14, 1
    %p51 = por %p49, %p50
    %p53 = scmp.ne.s32.totalorder %s36, %s52
    %p54 = scmp.eq.s32.totalorder %s14, 0
    %p55 = por %p53, %p54
    %s56 = ssub.s32 %s15, %s27
    %p57 = scmp.eq.s32.totalorder %s56, 0
    %s59 = sadd.s32 %s58, 1
    %s60 = scalar_select %p57, %s58, %s59
    %p63 = pneg %p57
    %p64 = scmp.eq.s32.totalorder %s8, 1
    %p65 = por %p63, %p64
    %p66 = scmp.ne.s32.totalorder %s58, %s61
    %p67 = scmp.eq.s32.totalorder %s8, 0
    %p68 = por %p66, %p67
    %p69 = scmp.ne.s32.totalorder %s58, %s61
    %p70 = scmp.eq.s32.totalorder %s13, 1
    %p71 = por %p69, %p70
    %p72 = scmp.ne.s32.totalorder %s61, %s62
    %p73 = scmp.eq.s32.totalorder %s13, 0
    %p74 = por %p72, %p73
    %p75 = scmp.ne.s32.totalorder %s61, %s62
    %p76 = scmp.eq.s32.totalorder %s14, 1
    %p77 = por %p75, %p76
    %p79 = scmp.ne.s32.totalorder %s62, %s78
    %p80 = scmp.eq.s32.totalorder %s14, 0
    %p81 = por %p79, %p80
    %s82 = ssub.s32 %s15, %s27
    %s83 = ssub.s32 %s16, %s23
    %s84 = sor.u32 %s82, %s83
    %p85 = scmp.eq.s32.totalorder %s84, 0
    %s87 = sadd.s32 %s86, 1
    %s88 = scalar_select %p85, %s86, %s87
    %p91 = pneg %p85
    %p92 = scmp.eq.s32.totalorder %s8, 1
    %p93 = por %p91, %p92
    %p94 = scmp.ne.s32.totalorder %s86, %s89
    %p95 = scmp.eq.s32.totalorder %s8, 0
    %p96 = por %p94, %p95
    %p97 = scmp.ne.s32.totalorder %s86, %s89
    %p98 = scmp.eq.s32.totalorder %s13, 1
    %p99 = por %p97, %p98
    %p100 = scmp.ne.s32.totalorder %s89, %s90
    %p101 = scmp.eq.s32.totalorder %s13, 0
    %p102 = por %p100, %p101
    %p103 = scmp.ne.s32.totalorder %s89, %s90
    %p104 = scmp.eq.s32.totalorder %s14, 1
    %p105 = por %p103, %p104
    %p107 = scmp.ne.s32.totalorder %s90, %s106
    %p108 = scmp.eq.s32.totalorder %s14, 0
    %p109 = por %p107, %p108
    %p110 = scmp.le.s32.totalorder 1, %s8
    %p111 = scmp.lt.s32.totalorder %s8, 3
    %p112 = pnand %p110, %p111
    %p113 = pneg %p112
    // Predicated region
    $region9: #{vit_forward.14} parent=5 // pred_check
      _
    $region10: #{vit_forward.14} parent=5 // pred_check_branch
      %115 = sbr.rel (%p112) target = $region12
    $region11: #{vit_forward.14} parent=5 // pred_region
      %s116 = ssub.s32 %s8, 1
    $region12: #{vit_forward.14} parent=5 // pred_fallthru
      _
    %p117 = scmp.lt.s32.totalorder %s8, 2
    // Predicated region
    $region13: #{vit_forward.14} parent=5 // pred_check
      %p118 = pneg %p117
    $region14: #{vit_forward.14} parent=5 // pred_check_branch
      %120 = sbr.rel (%p118) target = $region16
    $region15: #{vit_forward.14} parent=5 // pred_region
      // Predicated region
      $region17: #{vit_forward.14} parent=15 // pred_check
        %p121 = pneg %p42
      $region18: #{vit_forward.14} parent=15 // pred_check_branch
        %123 = sbr.rel (%p121) target = $region20
      $region19: #{vit_forward.14} parent=15 // pred_region
        %s124 = smul.u32 3, %s16
        %p125 = scmp.lt.s32.totalorder %s15, 1
        %s126 = scalar_select %p125, %s15, 1
        %p127 = scmp.lt.s32.totalorder %s124, 2
        %s128 = scalar_select %p127, %s124, 2
        %s129 = smul.addr %s126, 3
        %s130 = sadd.s32 %s128, %s129
        %s131 = smul.addr %s130, 4
        %s132 = scalar_lea.vmem %s0, %s131
        %s133 = smul.u32 3, %s16
      $region20: #{vit_forward.14} parent=15 // pred_fallthru
        _
      // Predicated region
      $region21: #{vit_forward.14} parent=15 // pred_check
        %p134 = pneg %p68
      $region22: #{vit_forward.14} parent=15 // pred_check_branch
        %136 = sbr.rel (%p134) target = $region24
      $region23: #{vit_forward.14} parent=15 // pred_region
        %p137 = scmp.lt.s32.totalorder %s15, 1
        %s138 = scalar_select %p137, %s15, 1
        %s139 = smul.addr %s138, 3
        %s140 = smul.addr %s139, 4
        %s141 = scalar_lea.vmem %s1, %s140
      $region24: #{vit_forward.14} parent=15 // pred_fallthru
        _
    $region16: #{vit_forward.14} parent=5 // pred_fallthru
      _
    %p142 = scmp.le.s32.totalorder 1, %s8
    %p143 = scmp.lt.s32.totalorder %s8, 3
    %p144 = pnand %p142, %p143
    %p145 = pneg %p144
    // Predicated region
    $region25: #{vit_forward.14} parent=5 // pred_check
      _
    $region26: #{vit_forward.14} parent=5 // pred_check_branch
      %147 = sbr.rel (%p144) target = $region28
    $region27: #{vit_forward.14} parent=5 // pred_region
      %s148 = ssub.s32 %s8, 1
      %s149 = smul.u32 3, %s18
      %p150 = scmp.lt.s32.totalorder %s17, 1
      %s151 = scalar_select %p150, %s17, 1
      %p152 = scmp.lt.s32.totalorder %s149, 2
      %s153 = scalar_select %p152, %s149, 2
      %s154 = smul.addr %s151, 3
      %s155 = sadd.s32 %s153, %s154
      %s156 = smul.addr %s155, 4
      %s157 = scalar_lea.vmem %s0, %s156
      %p158 = pneg %p48
      %p159 = pneg %p45
      %p160 = scmp.lt.s32.totalorder %s17, 1
      %s161 = scalar_select %p160, %s17, 1
      %s162 = smul.addr %s161, 3
      %s163 = smul.addr %s162, 4
      %s164 = scalar_lea.vmem %s1, %s163
      %p165 = pneg %p74
      %p166 = pneg %p71
      %p167 = pneg %p102
      %p168 = pneg %p99
      %s169 = smul.u32 3, %s18
      %p170 = scmp.lt.s32.totalorder %s17, 1
      %s171 = scalar_select %p170, %s17, 1
      %p172 = scmp.lt.s32.totalorder %s169, 2
      %s173 = scalar_select %p172, %s169, 2
      %s174 = smul.addr %s171, 3
      %s175 = sadd.s32 %s173, %s174
      %s176 = smul.addr %s175, 4
      %s177 = scalar_lea.vmem %s2, %s176
      %s178 = smul.u32 3, %s18
      %p179 = scmp.lt.s32.totalorder %s17, 1
      %s180 = scalar_select %p179, %s17, 1
      %p181 = scmp.lt.s32.totalorder %s178, 2
      %s182 = scalar_select %p181, %s178, 2
      %s183 = smul.addr %s180, 3
      %s184 = sadd.s32 %s182, %s183
      %s185 = smul.addr %s184, 4
      %s186 = scalar_lea.vmem %s0, %s185
      %s187 = smul.u32 3, %s18
      %p188 = scmp.lt.s32.totalorder %s17, 1
      %s189 = scalar_select %p188, %s17, 1
      %s190 = smul.addr %s189, 3
      %s191 = smul.addr %s190, 4
      %s192 = scalar_lea.vmem %s1, %s191
      %s193 = smul.u32 3, %s18
      %p194 = scmp.lt.s32.totalorder %s17, 1
      %s195 = scalar_select %p194, %s17, 1
      %p196 = scmp.lt.s32.totalorder %s193, 2
      %s197 = scalar_select %p196, %s193, 2
      %s198 = smul.addr %s195, 3
      %s199 = sadd.s32 %s197, %s198
      %s200 = smul.addr %s199, 4
      %s201 = scalar_lea.vmem %s2, %s200
      %s202 = smul.u32 3, %s18
      %v204 = vlaneseq
      %v205 = vand.u32 %v204, 127
      %vm206 = vcmp.lt.s32.totalorder %v205, 17
      %v207 = vld [vmem:[%s186] sm:$0xf]
      %v208 = vld [vmem:[%s186 + $0x4] sm:$0xf]
      %v209 = vld [vmem:[%s186 + $0x8] sm:$0xf]
      %v210 = vld [vmem:[%s192] sm:$0xf]
      %v211 = vld [vmem:[%s192 + $0x4] sm:$0xf]
      %v212 = vld [vmem:[%s192 + $0x8] sm:$0xf]
      %v216 = vunpack.c.l.b16 %v207
      %v217 = vunpack.c.l.b16 %v208
      %v218 = vunpack.c.l.b16 %v209
      %v219 = vpack.c.b16 %v217, %v216
      %v220 = vpack.c.b16 %v218, %v218
      %v224 = vunpack.c.l.b16 %v210
      %v225 = vunpack.c.l.b16 %v211
      %v226 = vunpack.c.l.b16 %v212
      %v227 = vpack.c.b16 %v225, %v224
      %v228 = vpack.c.b16 %v226, %v226
      %229 = vrot.lane.b32.xlu0 %v227, 96
      %v230 = vpop.permute.xlu0 %229
      %231 = vrot.lane.b32.xlu0 %v228, 96
      %v232 = vpop.permute.xlu0 %231
      %vm233 = vcmask 130048
      %v235 = vsel %vm233, %v219, 0
      %v238 = vsel %vm233, %v220, 0
      %v241 = vsel %vm233, %v230, 0
      %v244 = vsel %vm233, %v232, 0
      %246 = vmatprep.subr.bf16.mxu0 0
      %247 = vmatpush1.bf16.xpose.msra.mxu0 %v241
      %248 = vmatprep.subr.bf16.mxu0 0
      %249 = vmatpush1.bf16.xpose.msra.mxu0 %v244
      %250 = vmatprep.subr.bf16.mxu0 0
      %251 = vmatpush1.bf16.xpose.msra.mxu0 0
      %252 = vmatprep.subr.bf16.mxu0 0
      %253 = vmatpush1.bf16.xpose.msra.mxu0 0
      %254 = vmatprep.subr.bf16.mxu0 0
      %255 = vmatpush1.bf16.xpose.msra.mxu0 0
      %256 = vmatprep.subr.bf16.mxu0 0
      %257 = vmatpush1.bf16.xpose.msra.mxu0 0
      %258 = vmatprep.subr.bf16.mxu0 0
      %259 = vmatpush1.bf16.xpose.msra.mxu0 0
      %260 = vmatprep.subr.bf16.mxu0 0
      %261 = vmatpush1.bf16.xpose.msra.mxu0 0
      %262 = vmatprep.subr.bf16.mxu0 0
      %263 = vmatpush1.bf16.xpose.msra.mxu0 0
      %264 = vmatprep.subr.bf16.mxu0 0
      %265 = vmatpush1.bf16.xpose.msra.mxu0 0
      %266 = vmatprep.subr.bf16.mxu0 0
      %267 = vmatpush1.bf16.xpose.msra.mxu0 0
      %268 = vmatprep.subr.bf16.mxu0 0
      %269 = vmatpush1.bf16.xpose.msra.mxu0 0
      %270 = vmatprep.subr.bf16.mxu0 0
      %271 = vmatpush1.bf16.xpose.msra.mxu0 0
      %272 = vmatprep.subr.bf16.mxu0 0
      %273 = vmatpush1.bf16.xpose.msra.mxu0 0
      %274 = vmatprep.subr.bf16.mxu0 0
      %275 = vmatpush1.bf16.xpose.msra.mxu0 0
      %276 = vmatprep.subr.bf16.mxu0 0
      %277 = vmatpush1.bf16.xpose.msra.mxu0 0
      %278 = vmatprep.mubr.bf16.mxu0 0
      %279 = vmatmul.mubr.bf16.gmra.mrb[0].mxu0 %v235
      %v280 = vpop.f32.mrb[0].mxu0
      %v281 = vadd.f32 0.0, %v280
      %v282 = vpop.f32.mrb[0].mxu0
      %v283 = vpop.f32.mrb[0].mxu0
      %v284 = vadd.f32 0.0, %v283
      %v285 = vpop.f32.mrb[0].mxu0
      %286 = vmatprep.mubr.bf16.mxu0 0
      %287 = vmatmul.mubr.bf16.gmra.mrb[0].mxu0 %v238
      %v288 = vpop.f32.mrb[0].mxu0
      %v289 = vadd.f32 0.0, %v288
      %v290 = vpop.f32.mrb[0].mxu0
      %v291 = vpop.f32.mrb[0].mxu0
      %v292 = vpop.f32.mrb[0].mxu0
      %293 = vdwg.mxu0
      %v294 = vmul.f32 %v281, 0.25
      %v295 = vmul.f32 %v284, 0.25
      %v296 = vmul.f32 %v289, 0.25
      %v297 = vsel %vm206, 1, 0
      %vm298 = vcmp.eq.s32.totalorder %v297, 1
      %v299 = vsel %vm298, %v294, -1e+30
      %v300 = vsel %vm298, %v295, -1e+30
      %v301 = vsel %vm298, %v296, -1e+30
      %vm302 = vcmask 195584
      %v303 = vsel %vm302, %v299, -inf
      %304 = vmax.xlane.f32.xlu0 %v303
      %v305 = vpop.xlane.xlu0 %304
      %v306 = vsel %vm302, %v300, -inf
      %307 = vmax.xlane.f32.xlu0 %v306
      %v308 = vpop.xlane.xlu0 %307
      %v309 = vsel %vm302, %v301, -inf
      %310 = vmax.xlane.f32.xlu0 %v309
      %v311 = vpop.xlane.xlu0 %310
      %v312 = vsub.f32 %v299, %v305
      %v313 = vsub.f32 %v300, %v308
      %v314 = vsub.f32 %v301, %v311
      %v315 = vmul.f32 %v312, 1.442695
      %v316 = vpow.pop %v315
      %v317 = vmul.f32 %v313, 1.442695
      %v318 = vpow.pop %v317
      %v319 = vmul.f32 %v314, 1.442695
      %v320 = vpow.pop %v319
      %v321 = vsel %vm302, %v316, 0.0
      %322 = vadd.xlane.f32.xlu0 %v321
      %v323 = vpop.xlane.xlu0 %322
      %v324 = vsel %vm302, %v318, 0.0
      %325 = vadd.xlane.f32.xlu0 %v324
      %v326 = vpop.xlane.xlu0 %325
      %v327 = vsel %vm302, %v320, 0.0
      %328 = vadd.xlane.f32.xlu0 %v327
      %v329 = vpop.xlane.xlu0 %328
      %v330 = vrcp.pop %v323
      %v331 = vrcp.pop %v326
      %v332 = vrcp.pop %v329
      %v333 = vmul.f32 %v316, %v330
      %v334 = vmul.f32 %v318, %v331
      %v335 = vmul.f32 %v320, %v332
      %v336 = vpack.c.bf16 %v334, %v333
      %v337 = vpack.c.bf16 %v335, %v335
      %338 = vrot.lane.b32.xlu0 %v227, 64
      %v339 = vpop.permute.xlu0 %338
      %340 = vrot.lane.b32.xlu0 %v228, 64
      %v341 = vpop.permute.xlu0 %340
      %v344 = vsel %vm302, %v336, 0
      %v347 = vsel %vm302, %v337, 0
      %vm349 = vcmask 1043456
      %v351 = vsel %vm349, %v341, 0
      %353 = vmatprep.subr.bf16.mxu0 0
      %354 = vmatpush1.bf16.msra.mxu0 %v339
      %355 = vmatprep.subr.bf16.mxu0 0
      %356 = vmatpush1.bf16.msra.mxu0 %v351
      %357 = vmatprep.subr.bf16.mxu0 0
      %358 = vmatpush1.bf16.msra.mxu0 0
      %359 = vmatprep.subr.bf16.mxu0 0
      %360 = vmatpush1.bf16.msra.mxu0 0
      %361 = vmatprep.subr.bf16.mxu0 0
      %362 = vmatpush1.bf16.msra.mxu0 0
      %363 = vmatprep.subr.bf16.mxu0 0
      %364 = vmatpush1.bf16.msra.mxu0 0
      %365 = vmatprep.subr.bf16.mxu0 0
      %366 = vmatpush1.bf16.msra.mxu0 0
      %367 = vmatprep.subr.bf16.mxu0 0
      %368 = vmatpush1.bf16.msra.mxu0 0
      %369 = vmatprep.subr.bf16.mxu0 0
      %370 = vmatpush1.bf16.msra.mxu0 0
      %371 = vmatprep.subr.bf16.mxu0 0
      %372 = vmatpush1.bf16.msra.mxu0 0
      %373 = vmatprep.subr.bf16.mxu0 0
      %374 = vmatpush1.bf16.msra.mxu0 0
      %375 = vmatprep.subr.bf16.mxu0 0
      %376 = vmatpush1.bf16.msra.mxu0 0
      %377 = vmatprep.subr.bf16.mxu0 0
      %378 = vmatpush1.bf16.msra.mxu0 0
      %379 = vmatprep.subr.bf16.mxu0 0
      %380 = vmatpush1.bf16.msra.mxu0 0
      %381 = vmatprep.subr.bf16.mxu0 0
      %382 = vmatpush1.bf16.msra.mxu0 0
      %383 = vmatprep.subr.bf16.mxu0 0
      %384 = vmatpush1.bf16.msra.mxu0 0
      %385 = vmatprep.mubr.bf16.mxu0 0
      %386 = vmatmul.mubr.bf16.gmra.mrb[0].mxu0 %v344
      %v387 = vpop.f32.mrb[0].mxu0
      %v388 = vadd.f32 0.0, %v387
      %v389 = vpop.f32.mrb[0].mxu0
      %v390 = vpop.f32.mrb[0].mxu0
      %v391 = vadd.f32 0.0, %v390
      %v392 = vpop.f32.mrb[0].mxu0
      %393 = vmatprep.mubr.bf16.mxu0 0
      %394 = vmatmul.mubr.bf16.gmra.mrb[0].mxu0 %v347
      %v395 = vpop.f32.mrb[0].mxu0
      %v396 = vadd.f32 0.0, %v395
      %v397 = vpop.f32.mrb[0].mxu0
      %v398 = vpop.f32.mrb[0].mxu0
      %v399 = vpop.f32.mrb[0].mxu0
      %400 = vdwg.mxu0
      %401 = vrot.lane.b32.xlu0 %v219, 112
      %v402 = vpop.permute.xlu0 %401
      %403 = vrot.lane.b32.xlu0 %v220, 112
      %v404 = vpop.permute.xlu0 %403
      %405 = vrot.lane.b32.xlu0 %v227, 80
      %v406 = vpop.permute.xlu0 %405
      %407 = vrot.lane.b32.xlu0 %v228, 80
      %v408 = vpop.permute.xlu0 %407
      %v410 = vsel %vm233, %v402, 0
      %v413 = vsel %vm233, %v404, 0
      %v416 = vsel %vm233, %v406, 0
      %v419 = vsel %vm233, %v408, 0
      %421 = vmatprep.subr.bf16.mxu0 0
      %422 = vmatpush1.bf16.xpose.msra.mxu0 %v416
      %423 = vmatprep.subr.bf16.mxu0 0
      %424 = vmatpush1.bf16.xpose.msra.mxu0 %v419
      %425 = vmatprep.subr.bf16.mxu0 0
      %426 = vmatpush1.bf16.xpose.msra.mxu0 0
      %427 = vmatprep.subr.bf16.mxu0 0
      %428 = vmatpush1.bf16.xpose.msra.mxu0 0
      %429 = vmatprep.subr.bf16.mxu0 0
      %430 = vmatpush1.bf16.xpose.msra.mxu0 0
      %431 = vmatprep.subr.bf16.mxu0 0
      %432 = vmatpush1.bf16.xpose.msra.mxu0 0
      %433 = vmatprep.subr.bf16.mxu0 0
      %434 = vmatpush1.bf16.xpose.msra.mxu0 0
      %435 = vmatprep.subr.bf16.mxu0 0
      %436 = vmatpush1.bf16.xpose.msra.mxu0 0
      %437 = vmatprep.subr.bf16.mxu0 0
      %438 = vmatpush1.bf16.xpose.msra.mxu0 0
      %439 = vmatprep.subr.bf16.mxu0 0
      %440 = vmatpush1.bf16.xpose.msra.mxu0 0
      %441 = vmatprep.subr.bf16.mxu0 0
      %442 = vmatpush1.bf16.xpose.msra.mxu0 0
      %443 = vmatprep.subr.bf16.mxu0 0
      %444 = vmatpush1.bf16.xpose.msra.mxu0 0
      %445 = vmatprep.subr.bf16.mxu0 0
      %446 = vmatpush1.bf16.xpose.msra.mxu0 0
      %447 = vmatprep.subr.bf16.mxu0 0
      %448 = vmatpush1.bf16.xpose.msra.mxu0 0
      %449 = vmatprep.subr.bf16.mxu0 0
      %450 = vmatpush1.bf16.xpose.msra.mxu0 0
      %451 = vmatprep.subr.bf16.mxu0 0
      %452 = vmatpush1.bf16.xpose.msra.mxu0 0
      %453 = vmatprep.mubr.bf16.mxu0 0
      %454 = vmatmul.mubr.bf16.gmra.mrb[0].mxu0 %v410
      %v455 = vpop.f32.mrb[0].mxu0
      %v456 = vadd.f32 0.0, %v455
      %v457 = vpop.f32.mrb[0].mxu0
      %v458 = vpop.f32.mrb[0].mxu0
      %v459 = vadd.f32 0.0, %v458
      %v460 = vpop.f32.mrb[0].mxu0
      %461 = vmatprep.mubr.bf16.mxu0 0
      %462 = vmatmul.mubr.bf16.gmra.mrb[0].mxu0 %v413
      %v463 = vpop.f32.mrb[0].mxu0
      %v464 = vadd.f32 0.0, %v463
      %v465 = vpop.f32.mrb[0].mxu0
      %v466 = vpop.f32.mrb[0].mxu0
      %v467 = vpop.f32.mrb[0].mxu0
      %468 = vdwg.mxu0
      %v469 = vmul.f32 %v456, 0.25
      %v470 = vmul.f32 %v459, 0.25
      %v471 = vmul.f32 %v464, 0.25
      %v472 = vsel %vm298, %v469, -1e+30
      %v473 = vsel %vm298, %v470, -1e+30
      %v474 = vsel %vm298, %v471, -1e+30
      %v475 = vsel %vm302, %v472, -inf
      %476 = vmax.xlane.f32.xlu0 %v475
      %v477 = vpop.xlane.xlu0 %476
      %v478 = vsel %vm302, %v473, -inf
      %479 = vmax.xlane.f32.xlu0 %v478
      %v480 = vpop.xlane.xlu0 %479
      %v481 = vsel %vm302, %v474, -inf
      %482 = vmax.xlane.f32.xlu0 %v481
      %v483 = vpop.xlane.xlu0 %482
      %v484 = vsub.f32 %v472, %v477
      %v485 = vsub.f32 %v473, %v480
      %v486 = vsub.f32 %v474, %v483
      %v487 = vmul.f32 %v484, 1.442695
      %v488 = vpow.pop %v487
      %v489 = vmul.f32 %v485, 1.442695
      %v490 = vpow.pop %v489
      %v491 = vmul.f32 %v486, 1.442695
      %v492 = vpow.pop %v491
      %v493 = vsel %vm302, %v488, 0.0
      %494 = vadd.xlane.f32.xlu0 %v493
      %v495 = vpop.xlane.xlu0 %494
      %v496 = vsel %vm302, %v490, 0.0
      %497 = vadd.xlane.f32.xlu0 %v496
      %v498 = vpop.xlane.xlu0 %497
      %v499 = vsel %vm302, %v492, 0.0
      %500 = vadd.xlane.f32.xlu0 %v499
      %v501 = vpop.xlane.xlu0 %500
      %v502 = vrcp.pop %v495
      %v503 = vrcp.pop %v498
      %v504 = vrcp.pop %v501
      %v505 = vmul.f32 %v488, %v502
      %v506 = vmul.f32 %v490, %v503
      %v507 = vmul.f32 %v492, %v504
      %v508 = vpack.c.bf16 %v506, %v505
      %v509 = vpack.c.bf16 %v507, %v507
      %510 = vrot.lane.b32.xlu0 %v227, 48
      %v511 = vpop.permute.xlu0 %510
      %512 = vrot.lane.b32.xlu0 %v228, 48
      %v513 = vpop.permute.xlu0 %512
      %v516 = vsel %vm302, %v508, 0
      %v519 = vsel %vm302, %v509, 0
      %v522 = vsel %vm349, %v513, 0
      %524 = vmatprep.subr.bf16.mxu0 0
      %525 = vmatpush1.bf16.msra.mxu0 %v511
      %526 = vmatprep.subr.bf16.mxu0 0
      %527 = vmatpush1.bf16.msra.mxu0 %v522
      %528 = vmatprep.subr.bf16.mxu0 0
      %529 = vmatpush1.bf16.msra.mxu0 0
      %530 = vmatprep.subr.bf16.mxu0 0
      %531 = vmatpush1.bf16.msra.mxu0 0
      %532 = vmatprep.subr.bf16.mxu0 0
      %533 = vmatpush1.bf16.msra.mxu0 0
      %534 = vmatprep.subr.bf16.mxu0 0
      %535 = vmatpush1.bf16.msra.mxu0 0
      %536 = vmatprep.subr.bf16.mxu0 0
      %537 = vmatpush1.bf16.msra.mxu0 0
      %538 = vmatprep.subr.bf16.mxu0 0
      %539 = vmatpush1.bf16.msra.mxu0 0
      %540 = vmatprep.subr.bf16.mxu0 0
      %541 = vmatpush1.bf16.msra.mxu0 0
      %542 = vmatprep.subr.bf16.mxu0 0
      %543 = vmatpush1.bf16.msra.mxu0 0
      %544 = vmatprep.subr.bf16.mxu0 0
      %545 = vmatpush1.bf16.msra.mxu0 0
      %546 = vmatprep.subr.bf16.mxu0 0
      %547 = vmatpush1.bf16.msra.mxu0 0
      %548 = vmatprep.subr.bf16.mxu0 0
      %549 = vmatpush1.bf16.msra.mxu0 0
      %550 = vmatprep.subr.bf16.mxu0 0
      %551 = vmatpush1.bf16.msra.mxu0 0
      %552 = vmatprep.subr.bf16.mxu0 0
      %553 = vmatpush1.bf16.msra.mxu0 0
      %554 = vmatprep.subr.bf16.mxu0 0
      %555 = vmatpush1.bf16.msra.mxu0 0
      %556 = vmatprep.mubr.bf16.mxu0 0
      %557 = vmatmul.mubr.bf16.gmra.mrb[0].mxu0 %v516
      %v558 = vpop.f32.mrb[0].mxu0
      %v559 = vadd.f32 0.0, %v558
      %v560 = vpop.f32.mrb[0].mxu0
      %v561 = vpop.f32.mrb[0].mxu0
      %v562 = vadd.f32 0.0, %v561
      %v563 = vpop.f32.mrb[0].mxu0
      %564 = vmatprep.mubr.bf16.mxu0 0
      %565 = vmatmul.mubr.bf16.gmra.mrb[0].mxu0 %v519
      %v566 = vpop.f32.mrb[0].mxu0
      %v567 = vadd.f32 0.0, %v566
      %v568 = vpop.f32.mrb[0].mxu0
      %v569 = vpop.f32.mrb[0].mxu0
      %v570 = vpop.f32.mrb[0].mxu0
      %571 = vdwg.mxu0
      %575 = vrot.lane.b32.xlu0 %v559, 16
      %v576 = vpop.permute.xlu0 %575
      %577 = vrot.lane.b32.xlu0 %v562, 16
      %v578 = vpop.permute.xlu0 %577
      %579 = vrot.lane.b32.xlu0 %v567, 16
      %v580 = vpop.permute.xlu0 %579
      %v584 = vsel %vm233, %v388, %v576
      %v585 = vsel %vm233, %v391, %v578
      %v586 = vsel %vm233, %v396, %v580
      %v587 = vpack.c.bf16 %v585, %v584
      %v588 = vpack.c.bf16 %v586, %v586
      %v591 = vunpack.c.l.b16 %v587
      %v592 = vunpack.c.h.b16 %v587
      %v593 = vunpack.c.l.b16 %v588
      %v594 = vpack.c.b16 %v591, %v591
      %v595 = vpack.c.b16 %v592, %v592
      %v596 = vpack.c.b16 %v593, %v593
      %vm600 = vcmask 257024
      %601 = vst.msk [vmem:[%s201] sm:$0xf] %vm600, %v594
      %602 = vst.msk [vmem:[%s201 + $0x4] sm:$0xf] %vm600, %v595
      %603 = vst.msk [vmem:[%s201 + $0x8] sm:$0xf] %vm600, %v596
      %s604 = smul.u32 3, %s18
      %p605 = scmp.lt.s32.totalorder %s17, 1
      %s606 = scalar_select %p605, %s17, 1
      %p607 = scmp.lt.s32.totalorder %s604, 2
      %s608 = scalar_select %p607, %s604, 2
      %s609 = smul.addr %s606, 3
      %s610 = sadd.s32 %s608, %s609
      %s611 = smul.addr %s610, 4
      %s612 = scalar_lea.vmem %s2, %s611
      // Predicated region
      $region29: #{vit_forward.14} parent=27 // pred_check
        %p613 = pneg %p99
      $region30: #{vit_forward.14} parent=27 // pred_check_branch
        %615 = sbr.rel (%p613) target = $region32
      $region31: #{vit_forward.14} parent=27 // pred_region
        %s616 = smul.u32 3, %s18
      $region32: #{vit_forward.14} parent=27 // pred_fallthru
        _
    $region28: #{vit_forward.14} parent=5 // pred_fallthru
      _
    %p617 = scmp.le.s32.totalorder 2, %s8
    // Predicated region
    $region33: #{vit_forward.14} parent=5 // pred_check
      %p618 = pneg %p617
    $region34: #{vit_forward.14} parent=5 // pred_check_branch
      %620 = sbr.rel (%p618) target = $region36
    $region35: #{vit_forward.14} parent=5 // pred_region
      %s621 = ssub.s32 %s8, 2
      // Predicated region
      $region37: #{vit_forward.14} parent=35 // pred_check
        %p622 = pneg %p105
      $region38: #{vit_forward.14} parent=35 // pred_check_branch
        %624 = sbr.rel (%p622) target = $region40
      $region39: #{vit_forward.14} parent=35 // pred_region
        %s625 = smul.u32 3, %s20
        %p626 = scmp.lt.s32.totalorder %s19, 1
        %s627 = scalar_select %p626, %s19, 1
        %p628 = scmp.lt.s32.totalorder %s625, 2
        %s629 = scalar_select %p628, %s625, 2
        %s630 = smul.addr %s627, 3
        %s631 = sadd.s32 %s629, %s630
        %s632 = smul.addr %s631, 4
        %s633 = scalar_lea.vmem %s2, %s632
      $region40: #{vit_forward.14} parent=35 // pred_fallthru
        _
    $region36: #{vit_forward.14} parent=5 // pred_fallthru
      _
  $region6: #{vit_forward.14} parent=0 // loop_footer
    %s12 = sadd.s32 1, %s8
  $region7: #{vit_forward.14} parent=0 // loop_footer_branch
    %7 = sbr.rel target = $region3
  $region8: #{vit_forward.14} parent=0 // loop_exit
    _

// kernel: vit_forward.12
$region0: #{vit_forward.12}
  #allocation0 [shape = 'u32[]', space=smem, size = 0x4, offset = 0x4, fixed_abs, tag = 'smem constant byte address 0x4 - core index']
  #allocation1 [shape = 'u32[144,128]{1,0:T(1,128)}', space=vmem, size = 0x12000, scoped, tag = 'internal scratch']
  %s0 = inlined_call_operand.vmem [shape: f32[32,64], index: 0, kind: input, shape index: {}]
  %s1 = inlined_call_operand.vmem [shape: bf16[64,32], index: 1, kind: input, shape index: {}]
  %s2 = inlined_call_operand.vmem [shape: f32[1,32], index: 2, kind: input, shape index: {}]
  %s3 = inlined_call_operand.vmem [shape: f32[32,32], index: 3, kind: output, shape index: {}]
  %s4 = sld [smem:[#allocation0]]
  $region22: #{vit_forward.12} parent=0
    _
  %s6 = ssub.s32 1, %s4
  %s7 = scalar_select 0, %s6, %s4
  // Predicated region
  $region2: #{vit_forward.12} parent=0 // pred_check
    _
  $region3: #{vit_forward.12} parent=0 // pred_check_branch
    %9 = sbr.rel (0) target = $region5
  $region4: #{vit_forward.12} parent=0 // pred_region
    _
  $region5: #{vit_forward.12} parent=0 // pred_fallthru
    _
  // Predicated region
  $region6: #{vit_forward.12} parent=0 // pred_check
    _
  $region7: #{vit_forward.12} parent=0 // pred_check_branch
    %11 = sbr.rel (0) target = $region9
  $region8: #{vit_forward.12} parent=0 // pred_region
    _
  $region9: #{vit_forward.12} parent=0 // pred_fallthru
    _
  // Predicated region
  $region10: #{vit_forward.12} parent=0 // pred_check
    _
  $region11: #{vit_forward.12} parent=0 // pred_check_branch
    %13 = sbr.rel (0) target = $region13
  $region12: #{vit_forward.12} parent=0 // pred_region
    _
  $region13: #{vit_forward.12} parent=0 // pred_fallthru
    _
  %v15 = vld [vmem:[%s0] sm:$0xff]
  %v16 = vld [vmem:[%s0 + $0x8] sm:$0xff]
  %v17 = vld [vmem:[%s0 + $0x10] sm:$0xff]
  %v18 = vld [vmem:[%s0 + $0x18] sm:$0xff]
  %v19 = vpack.c.bf16 %v16, %v15
  %v20 = vpack.c.bf16 %v18, %v17
  %v21 = vld [vmem:[%s1] sm:$0xf]
  %v22 = vld [vmem:[%s1 + $0x4] sm:$0xf]
  %v23 = vld [vmem:[%s1 + $0x8] sm:$0xf]
  %v24 = vld [vmem:[%s1 + $0xc] sm:$0xf]
  %v25 = vld [vmem:[%s1 + $0x10] sm:$0xf]
  %v26 = vld [vmem:[%s1 + $0x14] sm:$0xf]
  %v27 = vld [vmem:[%s1 + $0x18] sm:$0xf]
  %v28 = vld [vmem:[%s1 + $0x1c] sm:$0xf]
  %v29 = vld [vmem:[%s2] sm:$0x1]
  %v31 = vlaneseq
  %v32 = vshrl.u32 %v31, 7
  %v33 = vsub.s32 0, %v32
  %v34 = vrot.slane %v29, %v33
  %v44 = vunpack.c.l.b16 %v21
  %v45 = vunpack.c.l.b16 %v22
  %v46 = vunpack.c.l.b16 %v23
  %v47 = vunpack.c.l.b16 %v24
  %v48 = vunpack.c.l.b16 %v25
  %v49 = vunpack.c.l.b16 %v26
  %v50 = vunpack.c.l.b16 %v27
  %v51 = vunpack.c.l.b16 %v28
  %v52 = vpack.c.b16 %v45, %v44
  %v53 = vpack.c.b16 %v47, %v46
  %v54 = vpack.c.b16 %v49, %v48
  %v55 = vpack.c.b16 %v51, %v50
  %vm60 = vcmask 523264
  %v62 = vsel %vm60, %v19, 0
  %v65 = vsel %vm60, %v20, 0
  %67 = vmatprep.subr.bf16.mxu0 0
  %68 = vmatpush1.bf16.msra.mxu0 %v52
  %69 = vmatprep.subr.bf16.mxu0 0
  %70 = vmatpush1.bf16.msra.mxu0 %v53
  %71 = vmatprep.subr.bf16.mxu0 0
  %72 = vmatpush1.bf16.msra.mxu0 %v54
  %73 = vmatprep.subr.bf16.mxu0 0
  %74 = vmatpush1.bf16.msra.mxu0 %v55
  %75 = vmatprep.subr.bf16.mxu0 0
  %76 = vmatpush1.bf16.msra.mxu0 0
  %77 = vmatprep.subr.bf16.mxu0 0
  %78 = vmatpush1.bf16.msra.mxu0 0
  %79 = vmatprep.subr.bf16.mxu0 0
  %80 = vmatpush1.bf16.msra.mxu0 0
  %81 = vmatprep.subr.bf16.mxu0 0
  %82 = vmatpush1.bf16.msra.mxu0 0
  %83 = vmatprep.subr.bf16.mxu0 0
  %84 = vmatpush1.bf16.msra.mxu0 0
  %85 = vmatprep.subr.bf16.mxu0 0
  %86 = vmatpush1.bf16.msra.mxu0 0
  %87 = vmatprep.subr.bf16.mxu0 0
  %88 = vmatpush1.bf16.msra.mxu0 0
  %89 = vmatprep.subr.bf16.mxu0 0
  %90 = vmatpush1.bf16.msra.mxu0 0
  %91 = vmatprep.subr.bf16.mxu0 0
  %92 = vmatpush1.bf16.msra.mxu0 0
  %93 = vmatprep.subr.bf16.mxu0 0
  %94 = vmatpush1.bf16.msra.mxu0 0
  %95 = vmatprep.subr.bf16.mxu0 0
  %96 = vmatpush1.bf16.msra.mxu0 0
  %97 = vmatprep.subr.bf16.mxu0 0
  %98 = vmatpush1.bf16.msra.mxu0 0
  %99 = vmatprep.mubr.bf16.mxu0 0
  %100 = vmatmul.mubr.bf16.gmra.mrb[0].mxu0 %v62
  %v101 = vpop.f32.mrb[0].mxu0
  %v102 = vadd.f32 %v34, %v101
  %v103 = vpop.f32.mrb[0].mxu0
  %v104 = vpop.f32.mrb[0].mxu0
  %v105 = vadd.f32 %v34, %v104
  %v106 = vpop.f32.mrb[0].mxu0
  %107 = vmatprep.mubr.bf16.mxu0 0
  %108 = vmatmul.mubr.bf16.gmra.mrb[0].mxu0 %v65
  %v109 = vpop.f32.mrb[0].mxu0
  %v110 = vadd.f32 %v34, %v109
  %v111 = vpop.f32.mrb[0].mxu0
  %v112 = vpop.f32.mrb[0].mxu0
  %v113 = vadd.f32 %v34, %v112
  %v114 = vpop.f32.mrb[0].mxu0
  %115 = vdwg.mxu0
  %vm116 = vcmask 261120
  %117 = vst.msk [vmem:[%s3] sm:$0xff] %vm116, %v102
  %118 = vst.msk [vmem:[%s3 + $0x8] sm:$0xff] %vm116, %v105
  %119 = vst.msk [vmem:[%s3 + $0x10] sm:$0xff] %vm116, %v110
  %120 = vst.msk [vmem:[%s3 + $0x18] sm:$0xff] %vm116, %v113
  // Predicated region
  $region14: #{vit_forward.12} parent=0 // pred_check
    _
  $region15: #{vit_forward.12} parent=0 // pred_check_branch
    %122 = sbr.rel (0) target = $region17
  $region16: #{vit_forward.12} parent=0 // pred_region
    _
  $region17: #{vit_forward.12} parent=0 // pred_fallthru
    _
  // Predicated region
  $region18: #{vit_forward.12} parent=0 // pred_check
    _
  $region19: #{vit_forward.12} parent=0 // pred_check_branch
    %124 = sbr.rel (0) target = $region21
  $region20: #{vit_forward.12} parent=0 // pred_region
    _
  $region21: #{vit_forward.12} parent=0 // pred_fallthru
    _

// kernel: vit_forward.13
$region0: #{vit_forward.13}
  #allocation0 [shape = 'u32[]', space=smem, size = 0x4, offset = 0x4, fixed_abs, tag = 'smem constant byte address 0x4 - core index']
  #allocation1 [shape = 'u32[144,128]{1,0:T(1,128)}', space=vmem, size = 0x12000, scoped, tag = 'internal scratch']
  %s0 = inlined_call_operand.vmem [shape: f32[48,32], index: 0, kind: input, shape index: {}]
  %s1 = inlined_call_operand.vmem [shape: f32[1,32], index: 1, kind: input, shape index: {}]
  %s2 = inlined_call_operand.vmem [shape: f32[1,32], index: 2, kind: input, shape index: {}]
  %s3 = inlined_call_operand.vmem [shape: bf16[32,96], index: 3, kind: input, shape index: {}]
  %s4 = inlined_call_operand.vmem [shape: f32[1,96], index: 4, kind: input, shape index: {}]
  %s5 = inlined_call_operand.vmem [shape: bf16[48,96], index: 5, kind: output, shape index: {}]
  %s6 = sld [smem:[#allocation0]]
  $region30: #{vit_forward.13} parent=0
    _
  %s8 = ssub.s32 1, %s6
  %s9 = scalar_select 0, %s8, %s6
  // Predicated region
  $region2: #{vit_forward.13} parent=0 // pred_check
    _
  $region3: #{vit_forward.13} parent=0 // pred_check_branch
    %11 = sbr.rel (0) target = $region5
  $region4: #{vit_forward.13} parent=0 // pred_region
    _
  $region5: #{vit_forward.13} parent=0 // pred_fallthru
    _
  // Predicated region
  $region6: #{vit_forward.13} parent=0 // pred_check
    _
  $region7: #{vit_forward.13} parent=0 // pred_check_branch
    %13 = sbr.rel (0) target = $region9
  $region8: #{vit_forward.13} parent=0 // pred_region
    _
  $region9: #{vit_forward.13} parent=0 // pred_fallthru
    _
  // Predicated region
  $region10: #{vit_forward.13} parent=0 // pred_check
    _
  $region11: #{vit_forward.13} parent=0 // pred_check_branch
    %15 = sbr.rel (0) target = $region13
  $region12: #{vit_forward.13} parent=0 // pred_region
    _
  $region13: #{vit_forward.13} parent=0 // pred_fallthru
    _
  // Predicated region
  $region14: #{vit_forward.13} parent=0 // pred_check
    _
  $region15: #{vit_forward.13} parent=0 // pred_check_branch
    %17 = sbr.rel (0) target = $region17
  $region16: #{vit_forward.13} parent=0 // pred_region
    _
  $region17: #{vit_forward.13} parent=0 // pred_fallthru
    _
  // Predicated region
  $region18: #{vit_forward.13} parent=0 // pred_check
    _
  $region19: #{vit_forward.13} parent=0 // pred_check_branch
    %19 = sbr.rel (0) target = $region21
  $region20: #{vit_forward.13} parent=0 // pred_region
    _
  $region21: #{vit_forward.13} parent=0 // pred_fallthru
    _
  %v21 = vld [vmem:[%s0] sm:$0xff]
  %v22 = vld [vmem:[%s0 + $0x8] sm:$0xff]
  %v23 = vld [vmem:[%s0 + $0x10] sm:$0xff]
  %v24 = vld [vmem:[%s0 + $0x18] sm:$0xff]
  %v25 = vld [vmem:[%s0 + $0x20] sm:$0xff]
  %v26 = vld [vmem:[%s0 + $0x28] sm:$0xff]
  %vm27 = vcmask 261120
  %v28 = vsel %vm27, %v21, 0.0
  %29 = vadd.xlane.f32.xlu0 %v28
  %v30 = vpop.xlane.xlu0 %29
  %v31 = vsel %vm27, %v22, 0.0
  %32 = vadd.xlane.f32.xlu0 %v31
  %v33 = vpop.xlane.xlu0 %32
  %v34 = vsel %vm27, %v23, 0.0
  %35 = vadd.xlane.f32.xlu0 %v34
  %v36 = vpop.xlane.xlu0 %35
  %v37 = vsel %vm27, %v24, 0.0
  %38 = vadd.xlane.f32.xlu0 %v37
  %v39 = vpop.xlane.xlu0 %38
  %v40 = vsel %vm27, %v25, 0.0
  %41 = vadd.xlane.f32.xlu0 %v40
  %v42 = vpop.xlane.xlu0 %41
  %v43 = vsel %vm27, %v26, 0.0
  %44 = vadd.xlane.f32.xlu0 %v43
  %v45 = vpop.xlane.xlu0 %44
  %v46 = vrcp.pop 32.0
  %v47 = vmul.f32 %v30, %v46
  %v48 = vmul.f32 %v33, %v46
  %v49 = vmul.f32 %v36, %v46
  %v50 = vmul.f32 %v39, %v46
  %v51 = vmul.f32 %v42, %v46
  %v52 = vmul.f32 %v45, %v46
  %v53 = vsub.f32 %v21, %v47
  %v54 = vsub.f32 %v22, %v48
  %v55 = vsub.f32 %v23, %v49
  %v56 = vsub.f32 %v24, %v50
  %v57 = vsub.f32 %v25, %v51
  %v58 = vsub.f32 %v26, %v52
  %v59 = vmul.f32 %v53, %v53
  %v60 = vmul.f32 %v54, %v54
  %v61 = vmul.f32 %v55, %v55
  %v62 = vmul.f32 %v56, %v56
  %v63 = vmul.f32 %v57, %v57
  %v64 = vmul.f32 %v58, %v58
  %v65 = vsel %vm27, %v59, 0.0
  %66 = vadd.xlane.f32.xlu0 %v65
  %v67 = vpop.xlane.xlu0 %66
  %v68 = vsel %vm27, %v60, 0.0
  %69 = vadd.xlane.f32.xlu0 %v68
  %v70 = vpop.xlane.xlu0 %69
  %v71 = vsel %vm27, %v61, 0.0
  %72 = vadd.xlane.f32.xlu0 %v71
  %v73 = vpop.xlane.xlu0 %72
  %v74 = vsel %vm27, %v62, 0.0
  %75 = vadd.xlane.f32.xlu0 %v74
  %v76 = vpop.xlane.xlu0 %75
  %v77 = vsel %vm27, %v63, 0.0
  %78 = vadd.xlane.f32.xlu0 %v77
  %v79 = vpop.xlane.xlu0 %78
  %v80 = vsel %vm27, %v64, 0.0
  %81 = vadd.xlane.f32.xlu0 %v80
  %v82 = vpop.xlane.xlu0 %81
  %v83 = vmul.f32 %v67, %v46
  %v84 = vmul.f32 %v70, %v46
  %v85 = vmul.f32 %v73, %v46
  %v86 = vmul.f32 %v76, %v46
  %v87 = vmul.f32 %v79, %v46
  %v88 = vmul.f32 %v82, %v46
  %v89 = vadd.f32 %v83, 1e-05
  %v90 = vadd.f32 %v84, 1e-05
  %v91 = vadd.f32 %v85, 1e-05
  %v92 = vadd.f32 %v86, 1e-05
  %v93 = vadd.f32 %v87, 1e-05
  %v94 = vadd.f32 %v88, 1e-05
  %v95 = vrsqrt.pop %v89
  %v96 = vrsqrt.pop %v90
  %v97 = vrsqrt.pop %v91
  %v98 = vrsqrt.pop %v92
  %v99 = vrsqrt.pop %v93
  %v100 = vrsqrt.pop %v94
  %v101 = vmul.f32 %v53, %v95
  %v102 = vmul.f32 %v54, %v96
  %v103 = vmul.f32 %v55, %v97
  %v104 = vmul.f32 %v56, %v98
  %v105 = vmul.f32 %v57, %v99
  %v106 = vmul.f32 %v58, %v100
  %v107 = vld [vmem:[%s1] sm:$0x1]
  %v109 = vlaneseq
  %v110 = vshrl.u32 %v109, 7
  %v111 = vsub.s32 0, %v110
  %v112 = vrot.slane %v107, %v111
  %v114 = vmul.f32 %v101, %v112
  %v115 = vmul.f32 %v102, %v112
  %v116 = vmul.f32 %v103, %v112
  %v117 = vmul.f32 %v104, %v112
  %v118 = vmul.f32 %v105, %v112
  %v119 = vmul.f32 %v106, %v112
  %v120 = vld [vmem:[%s2] sm:$0x1]
  %v122 = vlaneseq
  %v123 = vshrl.u32 %v122, 7
  %v124 = vsub.s32 0, %v123
  %v125 = vrot.slane %v120, %v124
  %v127 = vadd.f32 %v114, %v125
  %v128 = vadd.f32 %v115, %v125
  %v129 = vadd.f32 %v116, %v125
  %v130 = vadd.f32 %v117, %v125
  %v131 = vadd.f32 %v118, %v125
  %v132 = vadd.f32 %v119, %v125
  %v133 = vpack.c.bf16 %v128, %v127
  %v134 = vpack.c.bf16 %v130, %v129
  %v135 = vpack.c.bf16 %v132, %v131
  %v136 = vld [vmem:[%s3] sm:$0xf]
  %v137 = vld [vmem:[%s3 + $0x4] sm:$0xf]
  %v138 = vld [vmem:[%s3 + $0x8] sm:$0xf]
  %v139 = vld [vmem:[%s3 + $0xc] sm:$0xf]
  %v140 = vld [vmem:[%s4] sm:$0x1]
  %v142 = vlaneseq
  %v143 = vshrl.u32 %v142, 7
  %v144 = vsub.s32 0, %v143
  %v145 = vrot.slane %v140, %v144
  %v151 = vunpack.c.l.b16 %v136
  %v152 = vunpack.c.l.b16 %v137
  %v153 = vunpack.c.l.b16 %v138
  %v154 = vunpack.c.l.b16 %v139
  %v155 = vpack.c.b16 %v152, %v151
  %v156 = vpack.c.b16 %v154, %v153
  %v160 = vsel %vm27, %v133, 0
  %v163 = vsel %vm27, %v134, 0
  %v166 = vsel %vm27, %v135, 0
  %168 = vmatprep.subr.bf16.mxu0 0
  %169 = vmatpush1.bf16.msra.mxu0 %v155
  %170 = vmatprep.subr.bf16.mxu0 0
  %171 = vmatpush1.bf16.msra.mxu0 %v156
  %172 = vmatprep.subr.bf16.mxu0 0
  %173 = vmatpush1.bf16.msra.mxu0 0
  %174 = vmatprep.subr.bf16.mxu0 0
  %175 = vmatpush1.bf16.msra.mxu0 0
  %176 = vmatprep.subr.bf16.mxu0 0
  %177 = vmatpush1.bf16.msra.mxu0 0
  %178 = vmatprep.subr.bf16.mxu0 0
  %179 = vmatpush1.bf16.msra.mxu0 0
  %180 = vmatprep.subr.bf16.mxu0 0
  %181 = vmatpush1.bf16.msra.mxu0 0
  %182 = vmatprep.subr.bf16.mxu0 0
  %183 = vmatpush1.bf16.msra.mxu0 0
  %184 = vmatprep.subr.bf16.mxu0 0
  %185 = vmatpush1.bf16.msra.mxu0 0
  %186 = vmatprep.subr.bf16.mxu0 0
  %187 = vmatpush1.bf16.msra.mxu0 0
  %188 = vmatprep.subr.bf16.mxu0 0
  %189 = vmatpush1.bf16.msra.mxu0 0
  %190 = vmatprep.subr.bf16.mxu0 0
  %191 = vmatpush1.bf16.msra.mxu0 0
  %192 = vmatprep.subr.bf16.mxu0 0
  %193 = vmatpush1.bf16.msra.mxu0 0
  %194 = vmatprep.subr.bf16.mxu0 0
  %195 = vmatpush1.bf16.msra.mxu0 0
  %196 = vmatprep.subr.bf16.mxu0 0
  %197 = vmatpush1.bf16.msra.mxu0 0
  %198 = vmatprep.subr.bf16.mxu0 0
  %199 = vmatpush1.bf16.msra.mxu0 0
  %200 = vmatprep.mubr.bf16.mxu0 0
  %201 = vmatmul.mubr.bf16.gmra.mrb[0].mxu0 %v160
  %v202 = vpop.f32.mrb[0].mxu0
  %v203 = vadd.f32 %v145, %v202
  %v204 = vpop.f32.mrb[0].mxu0
  %v205 = vpop.f32.mrb[0].mxu0
  %v206 = vadd.f32 %v145, %v205
  %v207 = vpop.f32.mrb[0].mxu0
  %208 = vmatprep.mubr.bf16.mxu0 0
  %209 = vmatmul.mubr.bf16.gmra.mrb[0].mxu0 %v163
  %v210 = vpop.f32.mrb[0].mxu0
  %v211 = vadd.f32 %v145, %v210
  %v212 = vpop.f32.mrb[0].mxu0
  %v213 = vpop.f32.mrb[0].mxu0
  %v214 = vadd.f32 %v145, %v213
  %v215 = vpop.f32.mrb[0].mxu0
  %216 = vmatprep.mubr.bf16.mxu0 0
  %217 = vmatmul.mubr.bf16.gmra.mrb[0].mxu0 %v166
  %v218 = vpop.f32.mrb[0].mxu0
  %v219 = vadd.f32 %v145, %v218
  %v220 = vpop.f32.mrb[0].mxu0
  %v221 = vpop.f32.mrb[0].mxu0
  %v222 = vadd.f32 %v145, %v221
  %v223 = vpop.f32.mrb[0].mxu0
  %224 = vdwg.mxu0
  %v225 = vpack.c.bf16 %v206, %v203
  %v226 = vpack.c.bf16 %v214, %v211
  %v227 = vpack.c.bf16 %v222, %v219
  %v231 = vunpack.c.l.b16 %v225
  %v232 = vunpack.c.h.b16 %v225
  %v233 = vunpack.c.l.b16 %v226
  %v234 = vunpack.c.h.b16 %v226
  %v235 = vunpack.c.l.b16 %v227
  %v236 = vunpack.c.h.b16 %v227
  %v237 = vpack.c.b16 %v231, %v231
  %v238 = vpack.c.b16 %v232, %v232
  %v239 = vpack.c.b16 %v233, %v233
  %v240 = vpack.c.b16 %v234, %v234
  %v241 = vpack.c.b16 %v235, %v235
  %v242 = vpack.c.b16 %v236, %v236
  %vm249 = vcmask 781312
  %250 = vst.msk [vmem:[%s5] sm:$0xf] %vm249, %v237
  %251 = vst.msk [vmem:[%s5 + $0x4] sm:$0xf] %vm249, %v238
  %252 = vst.msk [vmem:[%s5 + $0x8] sm:$0xf] %vm249, %v239
  %253 = vst.msk [vmem:[%s5 + $0xc] sm:$0xf] %vm249, %v240
  %254 = vst.msk [vmem:[%s5 + $0x10] sm:$0xf] %vm249, %v241
  %255 = vst.msk [vmem:[%s5 + $0x14] sm:$0xf] %vm249, %v242
  // Predicated region
  $region22: #{vit_forward.13} parent=0 // pred_check
    _
  $region23: #{vit_forward.13} parent=0 // pred_check_branch
    %257 = sbr.rel (0) target = $region25
  $region24: #{vit_forward.13} parent=0 // pred_region
    _
  $region25: #{vit_forward.13} parent=0 // pred_fallthru
    _
  // Predicated region
  $region26: #{vit_forward.13} parent=0 // pred_check
    _
  $region27: #{vit_forward.13} parent=0 // pred_check_branch
    %259 = sbr.rel (0) target = $region29
  $region28: #{vit_forward.13} parent=0 // pred_region
    _
  $region29: #{vit_forward.13} parent=0 // pred_fallthru
    _

// kernel: vit_forward.15
$region0: #{vit_forward.15}
  #allocation0 [shape = 'u32[]', space=smem, size = 0x4, offset = 0x4, fixed_abs, tag = 'smem constant byte address 0x4 - core index']
  #allocation1 [shape = 'u32[144,128]{1,0:T(1,128)}', space=vmem, size = 0x12000, scoped, tag = 'internal scratch']
  %s0 = inlined_call_operand.vmem [shape: bf16[48,32], index: 0, kind: input, shape index: {}]
  %s1 = inlined_call_operand.vmem [shape: bf16[32,32], index: 1, kind: input, shape index: {}]
  %s2 = inlined_call_operand.vmem [shape: f32[1,32], index: 2, kind: input, shape index: {}]
  %s3 = inlined_call_operand.vmem [shape: f32[48,32], index: 3, kind: input, shape index: {}, may-alias: {3,4}]
  %s4 = inlined_call_operand.vmem [shape: f32[48,32], index: 4, kind: output, shape index: {}, may-alias: {3,4}]
  %s5 = sld [smem:[#allocation0]]
  $region26: #{vit_forward.15} parent=0
    _
  %s7 = ssub.s32 1, %s5
  %s8 = scalar_select 0, %s7, %s5
  // Predicated region
  $region2: #{vit_forward.15} parent=0 // pred_check
    _
  $region3: #{vit_forward.15} parent=0 // pred_check_branch
    %10 = sbr.rel (0) target = $region5
  $region4: #{vit_forward.15} parent=0 // pred_region
    _
  $region5: #{vit_forward.15} parent=0 // pred_fallthru
    _
  // Predicated region
  $region6: #{vit_forward.15} parent=0 // pred_check
    _
  $region7: #{vit_forward.15} parent=0 // pred_check_branch
    %12 = sbr.rel (0) target = $region9
  $region8: #{vit_forward.15} parent=0 // pred_region
    _
  $region9: #{vit_forward.15} parent=0 // pred_fallthru
    _
  // Predicated region
  $region10: #{vit_forward.15} parent=0 // pred_check
    _
  $region11: #{vit_forward.15} parent=0 // pred_check_branch
    %14 = sbr.rel (0) target = $region13
  $region12: #{vit_forward.15} parent=0 // pred_region
    _
  $region13: #{vit_forward.15} parent=0 // pred_fallthru
    _
  // Predicated region
  $region14: #{vit_forward.15} parent=0 // pred_check
    _
  $region15: #{vit_forward.15} parent=0 // pred_check_branch
    %16 = sbr.rel (0) target = $region17
  $region16: #{vit_forward.15} parent=0 // pred_region
    _
  $region17: #{vit_forward.15} parent=0 // pred_fallthru
    _
  %v18 = vld [vmem:[%s0] sm:$0xf]
  %v19 = vld [vmem:[%s0 + $0x4] sm:$0xf]
  %v20 = vld [vmem:[%s0 + $0x8] sm:$0xf]
  %v21 = vld [vmem:[%s0 + $0xc] sm:$0xf]
  %v22 = vld [vmem:[%s0 + $0x10] sm:$0xf]
  %v23 = vld [vmem:[%s0 + $0x14] sm:$0xf]
  %v24 = vld [vmem:[%s1] sm:$0xf]
  %v25 = vld [vmem:[%s1 + $0x4] sm:$0xf]
  %v26 = vld [vmem:[%s1 + $0x8] sm:$0xf]
  %v27 = vld [vmem:[%s1 + $0xc] sm:$0xf]
  %v28 = vld [vmem:[%s2] sm:$0x1]
  %v30 = vlaneseq
  %v31 = vshrl.u32 %v30, 7
  %v32 = vsub.s32 0, %v31
  %v33 = vrot.slane %v28, %v32
  %v41 = vunpack.c.l.b16 %v18
  %v42 = vunpack.c.l.b16 %v19
  %v43 = vunpack.c.l.b16 %v20
  %v44 = vunpack.c.l.b16 %v21
  %v45 = vunpack.c.l.b16 %v22
  %v46 = vunpack.c.l.b16 %v23
  %v47 = vpack.c.b16 %v42, %v41
  %v48 = vpack.c.b16 %v44, %v43
  %v49 = vpack.c.b16 %v46, %v45
  %v54 = vunpack.c.l.b16 %v24
  %v55 = vunpack.c.l.b16 %v25
  %v56 = vunpack.c.l.b16 %v26
  %v57 = vunpack.c.l.b16 %v27
  %v58 = vpack.c.b16 %v55, %v54
  %v59 = vpack.c.b16 %v57, %v56
  %vm62 = vcmask 261120
  %v64 = vsel %vm62, %v47, 0
  %v67 = vsel %vm62, %v48, 0
  %v70 = vsel %vm62, %v49, 0
  %72 = vmatprep.subr.bf16.mxu0 0
  %73 = vmatpush1.bf16.msra.mxu0 %v58
  %74 = vmatprep.subr.bf16.mxu0 0
  %75 = vmatpush1.bf16.msra.mxu0 %v59
  %76 = vmatprep.subr.bf16.mxu0 0
  %77 = vmatpush1.bf16.msra.mxu0 0
  %78 = vmatprep.subr.bf16.mxu0 0
  %79 = vmatpush1.bf16.msra.mxu0 0
  %80 = vmatprep.subr.bf16.mxu0 0
  %81 = vmatpush1.bf16.msra.mxu0 0
  %82 = vmatprep.subr.bf16.mxu0 0
  %83 = vmatpush1.bf16.msra.mxu0 0
  %84 = vmatprep.subr.bf16.mxu0 0
  %85 = vmatpush1.bf16.msra.mxu0 0
  %86 = vmatprep.subr.bf16.mxu0 0
  %87 = vmatpush1.bf16.msra.mxu0 0
  %88 = vmatprep.subr.bf16.mxu0 0
  %89 = vmatpush1.bf16.msra.mxu0 0
  %90 = vmatprep.subr.bf16.mxu0 0
  %91 = vmatpush1.bf16.msra.mxu0 0
  %92 = vmatprep.subr.bf16.mxu0 0
  %93 = vmatpush1.bf16.msra.mxu0 0
  %94 = vmatprep.subr.bf16.mxu0 0
  %95 = vmatpush1.bf16.msra.mxu0 0
  %96 = vmatprep.subr.bf16.mxu0 0
  %97 = vmatpush1.bf16.msra.mxu0 0
  %98 = vmatprep.subr.bf16.mxu0 0
  %99 = vmatpush1.bf16.msra.mxu0 0
  %100 = vmatprep.subr.bf16.mxu0 0
  %101 = vmatpush1.bf16.msra.mxu0 0
  %102 = vmatprep.subr.bf16.mxu0 0
  %103 = vmatpush1.bf16.msra.mxu0 0
  %104 = vmatprep.mubr.bf16.mxu0 0
  %105 = vmatmul.mubr.bf16.gmra.mrb[0].mxu0 %v64
  %v106 = vpop.f32.mrb[0].mxu0
  %v107 = vadd.f32 %v33, %v106
  %v108 = vpop.f32.mrb[0].mxu0
  %v109 = vpop.f32.mrb[0].mxu0
  %v110 = vadd.f32 %v33, %v109
  %v111 = vpop.f32.mrb[0].mxu0
  %112 = vmatprep.mubr.bf16.mxu0 0
  %113 = vmatmul.mubr.bf16.gmra.mrb[0].mxu0 %v67
  %v114 = vpop.f32.mrb[0].mxu0
  %v115 = vadd.f32 %v33, %v114
  %v116 = vpop.f32.mrb[0].mxu0
  %v117 = vpop.f32.mrb[0].mxu0
  %v118 = vadd.f32 %v33, %v117
  %v119 = vpop.f32.mrb[0].mxu0
  %120 = vmatprep.mubr.bf16.mxu0 0
  %121 = vmatmul.mubr.bf16.gmra.mrb[0].mxu0 %v70
  %v122 = vpop.f32.mrb[0].mxu0
  %v123 = vadd.f32 %v33, %v122
  %v124 = vpop.f32.mrb[0].mxu0
  %v125 = vpop.f32.mrb[0].mxu0
  %v126 = vadd.f32 %v33, %v125
  %v127 = vpop.f32.mrb[0].mxu0
  %128 = vdwg.mxu0
  %v129 = vld [vmem:[%s3] sm:$0xff]
  %v130 = vld [vmem:[%s3 + $0x8] sm:$0xff]
  %v131 = vld [vmem:[%s3 + $0x10] sm:$0xff]
  %v132 = vld [vmem:[%s3 + $0x18] sm:$0xff]
  %v133 = vld [vmem:[%s3 + $0x20] sm:$0xff]
  %v134 = vld [vmem:[%s3 + $0x28] sm:$0xff]
  %v135 = vadd.f32 %v107, %v129
  %v136 = vadd.f32 %v110, %v130
  %v137 = vadd.f32 %v115, %v131
  %v138 = vadd.f32 %v118, %v132
  %v139 = vadd.f32 %v123, %v133
  %v140 = vadd.f32 %v126, %v134
  %141 = vst.msk [vmem:[%s4] sm:$0xff] %vm62, %v135
  %142 = vst.msk [vmem:[%s4 + $0x8] sm:$0xff] %vm62, %v136
  %143 = vst.msk [vmem:[%s4 + $0x10] sm:$0xff] %vm62, %v137
  %144 = vst.msk [vmem:[%s4 + $0x18] sm:$0xff] %vm62, %v138
  %145 = vst.msk [vmem:[%s4 + $0x20] sm:$0xff] %vm62, %v139
  %146 = vst.msk [vmem:[%s4 + $0x28] sm:$0xff] %vm62, %v140
  // Predicated region
  $region18: #{vit_forward.15} parent=0 // pred_check
    _
  $region19: #{vit_forward.15} parent=0 // pred_check_branch
    %148 = sbr.rel (0) target = $region21
  $region20: #{vit_forward.15} parent=0 // pred_region
    _
  $region21: #{vit_forward.15} parent=0 // pred_fallthru
    _
  // Predicated region
  $region22: #{vit_forward.15} parent=0 // pred_check
    _
  $region23: #{vit_forward.15} parent=0 // pred_check_branch
    %150 = sbr.rel (0) target = $region25
  $region24: #{vit_forward.15} parent=0 // pred_region
    _
  $region25: #{vit_forward.15} parent=0 // pred_fallthru
    _

// kernel: vit_forward.17
$region0: #{vit_forward.17}
  #allocation0 [shape = 'u32[]', space=smem, size = 0x4, offset = 0x4, fixed_abs, tag = 'smem constant byte address 0x4 - core index']
  #allocation1 [shape = 'u32[144,128]{1,0:T(1,128)}', space=vmem, size = 0x12000, scoped, tag = 'internal scratch']
  %s0 = inlined_call_operand.vmem [shape: bf16[48,128], index: 0, kind: input, shape index: {}]
  %s1 = inlined_call_operand.vmem [shape: bf16[128,32], index: 1, kind: input, shape index: {}]
  %s2 = inlined_call_operand.vmem [shape: f32[1,32], index: 2, kind: input, shape index: {}]
  %s3 = inlined_call_operand.vmem [shape: f32[48,32], index: 3, kind: input, shape index: {}, may-alias: {3,4}]
  %s4 = inlined_call_operand.vmem [shape: f32[48,32], index: 4, kind: output, shape index: {}, may-alias: {3,4}]
  %s5 = sld [smem:[#allocation0]]
  $region26: #{vit_forward.17} parent=0
    _
  %s7 = ssub.s32 1, %s5
  %s8 = scalar_select 0, %s7, %s5
  // Predicated region
  $region2: #{vit_forward.17} parent=0 // pred_check
    _
  $region3: #{vit_forward.17} parent=0 // pred_check_branch
    %10 = sbr.rel (0) target = $region5
  $region4: #{vit_forward.17} parent=0 // pred_region
    _
  $region5: #{vit_forward.17} parent=0 // pred_fallthru
    _
  // Predicated region
  $region6: #{vit_forward.17} parent=0 // pred_check
    _
  $region7: #{vit_forward.17} parent=0 // pred_check_branch
    %12 = sbr.rel (0) target = $region9
  $region8: #{vit_forward.17} parent=0 // pred_region
    _
  $region9: #{vit_forward.17} parent=0 // pred_fallthru
    _
  // Predicated region
  $region10: #{vit_forward.17} parent=0 // pred_check
    _
  $region11: #{vit_forward.17} parent=0 // pred_check_branch
    %14 = sbr.rel (0) target = $region13
  $region12: #{vit_forward.17} parent=0 // pred_region
    _
  $region13: #{vit_forward.17} parent=0 // pred_fallthru
    _
  // Predicated region
  $region14: #{vit_forward.17} parent=0 // pred_check
    _
  $region15: #{vit_forward.17} parent=0 // pred_check_branch
    %16 = sbr.rel (0) target = $region17
  $region16: #{vit_forward.17} parent=0 // pred_region
    _
  $region17: #{vit_forward.17} parent=0 // pred_fallthru
    _
  %v18 = vld [vmem:[%s0] sm:$0xf]
  %v19 = vld [vmem:[%s0 + $0x4] sm:$0xf]
  %v20 = vld [vmem:[%s0 + $0x8] sm:$0xf]
  %v21 = vld [vmem:[%s0 + $0xc] sm:$0xf]
  %v22 = vld [vmem:[%s0 + $0x10] sm:$0xf]
  %v23 = vld [vmem:[%s0 + $0x14] sm:$0xf]
  %v24 = vld [vmem:[%s1] sm:$0xf]
  %v25 = vld [vmem:[%s1 + $0x4] sm:$0xf]
  %v26 = vld [vmem:[%s1 + $0x8] sm:$0xf]
  %v27 = vld [vmem:[%s1 + $0xc] sm:$0xf]
  %v28 = vld [vmem:[%s1 + $0x10] sm:$0xf]
  %v29 = vld [vmem:[%s1 + $0x14] sm:$0xf]
  %v30 = vld [vmem:[%s1 + $0x18] sm:$0xf]
  %v31 = vld [vmem:[%s1 + $0x1c] sm:$0xf]
  %v32 = vld [vmem:[%s1 + $0x20] sm:$0xf]
  %v33 = vld [vmem:[%s1 + $0x24] sm:$0xf]
  %v34 = vld [vmem:[%s1 + $0x28] sm:$0xf]
  %v35 = vld [vmem:[%s1 + $0x2c] sm:$0xf]
  %v36 = vld [vmem:[%s1 + $0x30] sm:$0xf]
  %v37 = vld [vmem:[%s1 + $0x34] sm:$0xf]
  %v38 = vld [vmem:[%s1 + $0x38] sm:$0xf]
  %v39 = vld [vmem:[%s1 + $0x3c] sm:$0xf]
  %v40 = vld [vmem:[%s2] sm:$0x1]
  %v42 = vlaneseq
  %v43 = vshrl.u32 %v42, 7
  %v44 = vsub.s32 0, %v43
  %v45 = vrot.slane %v40, %v44
  %v53 = vunpack.c.l.b16 %v18
  %v54 = vunpack.c.l.b16 %v19
  %v55 = vunpack.c.l.b16 %v20
  %v56 = vunpack.c.l.b16 %v21
  %v57 = vunpack.c.l.b16 %v22
  %v58 = vunpack.c.l.b16 %v23
  %v59 = vpack.c.b16 %v54, %v53
  %v60 = vpack.c.b16 %v56, %v55
  %v61 = vpack.c.b16 %v58, %v57
  %v81 = vunpack.c.l.b16 %v24
  %v82 = vunpack.c.l.b16 %v25
  %v83 = vunpack.c.l.b16 %v26
  %v84 = vunpack.c.l.b16 %v27
  %v85 = vunpack.c.l.b16 %v28
  %v86 = vunpack.c.l.b16 %v29
  %v87 = vunpack.c.l.b16 %v30
  %v88 = vunpack.c.l.b16 %v31
  %v89 = vunpack.c.l.b16 %v32
  %v90 = vunpack.c.l.b16 %v33
  %v91 = vunpack.c.l.b16 %v34
  %v92 = vunpack.c.l.b16 %v35
  %v93 = vunpack.c.l.b16 %v36
  %v94 = vunpack.c.l.b16 %v37
  %v95 = vunpack.c.l.b16 %v38
  %v96 = vunpack.c.l.b16 %v39
  %v97 = vpack.c.b16 %v82, %v81
  %v98 = vpack.c.b16 %v84, %v83
  %v99 = vpack.c.b16 %v86, %v85
  %v100 = vpack.c.b16 %v88, %v87
  %v101 = vpack.c.b16 %v90, %v89
  %v102 = vpack.c.b16 %v92, %v91
  %v103 = vpack.c.b16 %v94, %v93
  %v104 = vpack.c.b16 %v96, %v95
  %113 = vmatprep.subr.bf16.mxu0 0
  %114 = vmatpush1.bf16.msra.mxu0 %v97
  %115 = vmatprep.subr.bf16.mxu0 0
  %116 = vmatpush1.bf16.msra.mxu0 %v98
  %117 = vmatprep.subr.bf16.mxu0 0
  %118 = vmatpush1.bf16.msra.mxu0 %v99
  %119 = vmatprep.subr.bf16.mxu0 0
  %120 = vmatpush1.bf16.msra.mxu0 %v100
  %121 = vmatprep.subr.bf16.mxu0 0
  %122 = vmatpush1.bf16.msra.mxu0 %v101
  %123 = vmatprep.subr.bf16.mxu0 0
  %124 = vmatpush1.bf16.msra.mxu0 %v102
  %125 = vmatprep.subr.bf16.mxu0 0
  %126 = vmatpush1.bf16.msra.mxu0 %v103
  %127 = vmatprep.subr.bf16.mxu0 0
  %128 = vmatpush1.bf16.msra.mxu0 %v104
  %129 = vmatprep.subr.bf16.mxu0 0
  %130 = vmatpush1.bf16.msra.mxu0 0
  %131 = vmatprep.subr.bf16.mxu0 0
  %132 = vmatpush1.bf16.msra.mxu0 0
  %133 = vmatprep.subr.bf16.mxu0 0
  %134 = vmatpush1.bf16.msra.mxu0 0
  %135 = vmatprep.subr.bf16.mxu0 0
  %136 = vmatpush1.bf16.msra.mxu0 0
  %137 = vmatprep.subr.bf16.mxu0 0
  %138 = vmatpush1.bf16.msra.mxu0 0
  %139 = vmatprep.subr.bf16.mxu0 0
  %140 = vmatpush1.bf16.msra.mxu0 0
  %141 = vmatprep.subr.bf16.mxu0 0
  %142 = vmatpush1.bf16.msra.mxu0 0
  %143 = vmatprep.subr.bf16.mxu0 0
  %144 = vmatpush1.bf16.msra.mxu0 0
  %145 = vmatprep.mubr.bf16.mxu0 0
  %146 = vmatmul.mubr.bf16.gmra.mrb[0].mxu0 %v59
  %v147 = vpop.f32.mrb[0].mxu0
  %v148 = vadd.f32 %v45, %v147
  %v149 = vpop.f32.mrb[0].mxu0
  %v150 = vpop.f32.mrb[0].mxu0
  %v151 = vadd.f32 %v45, %v150
  %v152 = vpop.f32.mrb[0].mxu0
  %153 = vmatprep.mubr.bf16.mxu0 0
  %154 = vmatmul.mubr.bf16.gmra.mrb[0].mxu0 %v60
  %v155 = vpop.f32.mrb[0].mxu0
  %v156 = vadd.f32 %v45, %v155
  %v157 = vpop.f32.mrb[0].mxu0
  %v158 = vpop.f32.mrb[0].mxu0
  %v159 = vadd.f32 %v45, %v158
  %v160 = vpop.f32.mrb[0].mxu0
  %161 = vmatprep.mubr.bf16.mxu0 0
  %162 = vmatmul.mubr.bf16.gmra.mrb[0].mxu0 %v61
  %v163 = vpop.f32.mrb[0].mxu0
  %v164 = vadd.f32 %v45, %v163
  %v165 = vpop.f32.mrb[0].mxu0
  %v166 = vpop.f32.mrb[0].mxu0
  %v167 = vadd.f32 %v45, %v166
  %v168 = vpop.f32.mrb[0].mxu0
  %169 = vdwg.mxu0
  %v170 = vld [vmem:[%s3] sm:$0xff]
  %v171 = vld [vmem:[%s3 + $0x8] sm:$0xff]
  %v172 = vld [vmem:[%s3 + $0x10] sm:$0xff]
  %v173 = vld [vmem:[%s3 + $0x18] sm:$0xff]
  %v174 = vld [vmem:[%s3 + $0x20] sm:$0xff]
  %v175 = vld [vmem:[%s3 + $0x28] sm:$0xff]
  %v176 = vadd.f32 %v148, %v170
  %v177 = vadd.f32 %v151, %v171
  %v178 = vadd.f32 %v156, %v172
  %v179 = vadd.f32 %v159, %v173
  %v180 = vadd.f32 %v164, %v174
  %v181 = vadd.f32 %v167, %v175
  %vm182 = vcmask 261120
  %183 = vst.msk [vmem:[%s4] sm:$0xff] %vm182, %v176
  %184 = vst.msk [vmem:[%s4 + $0x8] sm:$0xff] %vm182, %v177
  %185 = vst.msk [vmem:[%s4 + $0x10] sm:$0xff] %vm182, %v178
  %186 = vst.msk [vmem:[%s4 + $0x18] sm:$0xff] %vm182, %v179
  %187 = vst.msk [vmem:[%s4 + $0x20] sm:$0xff] %vm182, %v180
  %188 = vst.msk [vmem:[%s4 + $0x28] sm:$0xff] %vm182, %v181
  // Predicated region
  $region18: #{vit_forward.17} parent=0 // pred_check
    _
  $region19: #{vit_forward.17} parent=0 // pred_check_branch
    %190 = sbr.rel (0) target = $region21
  $region20: #{vit_forward.17} parent=0 // pred_region
    _
  $region21: #{vit_forward.17} parent=0 // pred_fallthru
    _
  // Predicated region
  $region22: #{vit_forward.17} parent=0 // pred_check
    _
  $region23: #{vit_forward.17} parent=0 // pred_check_branch
    %192 = sbr.rel (0) target = $region25
  $region24: #{vit_forward.17} parent=0 // pred_region
    _
  $region25: #{vit_forward.17} parent=0 // pred_fallthru
    _

// kernel: vit_forward.16
$region0: #{vit_forward.16}
  #allocation0 [shape = 'u32[]', space=smem, size = 0x4, offset = 0x4, fixed_abs, tag = 'smem constant byte address 0x4 - core index']
  #allocation1 [shape = 'u32[144,128]{1,0:T(1,128)}', space=vmem, size = 0x12000, scoped, tag = 'internal scratch']
  %s0 = inlined_call_operand.vmem [shape: f32[48,32], index: 0, kind: input, shape index: {}]
  %s1 = inlined_call_operand.vmem [shape: f32[1,32], index: 1, kind: input, shape index: {}]
  %s2 = inlined_call_operand.vmem [shape: f32[1,32], index: 2, kind: input, shape index: {}]
  %s3 = inlined_call_operand.vmem [shape: bf16[32,128], index: 3, kind: input, shape index: {}]
  %s4 = inlined_call_operand.vmem [shape: f32[1,128], index: 4, kind: input, shape index: {}]
  %s5 = inlined_call_operand.vmem [shape: bf16[48,128], index: 5, kind: output, shape index: {}]
  %s6 = sld [smem:[#allocation0]]
  $region30: #{vit_forward.16} parent=0
    _
  %s8 = ssub.s32 1, %s6
  %s9 = scalar_select 0, %s8, %s6
  // Predicated region
  $region2: #{vit_forward.16} parent=0 // pred_check
    _
  $region3: #{vit_forward.16} parent=0 // pred_check_branch
    %11 = sbr.rel (0) target = $region5
  $region4: #{vit_forward.16} parent=0 // pred_region
    _
  $region5: #{vit_forward.16} parent=0 // pred_fallthru
    _
  // Predicated region
  $region6: #{vit_forward.16} parent=0 // pred_check
    _
  $region7: #{vit_forward.16} parent=0 // pred_check_branch
    %13 = sbr.rel (0) target = $region9
  $region8: #{vit_forward.16} parent=0 // pred_region
    _
  $region9: #{vit_forward.16} parent=0 // pred_fallthru
    _
  // Predicated region
  $region10: #{vit_forward.16} parent=0 // pred_check
    _
  $region11: #{vit_forward.16} parent=0 // pred_check_branch
    %15 = sbr.rel (0) target = $region13
  $region12: #{vit_forward.16} parent=0 // pred_region
    _
  $region13: #{vit_forward.16} parent=0 // pred_fallthru
    _
  // Predicated region
  $region14: #{vit_forward.16} parent=0 // pred_check
    _
  $region15: #{vit_forward.16} parent=0 // pred_check_branch
    %17 = sbr.rel (0) target = $region17
  $region16: #{vit_forward.16} parent=0 // pred_region
    _
  $region17: #{vit_forward.16} parent=0 // pred_fallthru
    _
  // Predicated region
  $region18: #{vit_forward.16} parent=0 // pred_check
    _
  $region19: #{vit_forward.16} parent=0 // pred_check_branch
    %19 = sbr.rel (0) target = $region21
  $region20: #{vit_forward.16} parent=0 // pred_region
    _
  $region21: #{vit_forward.16} parent=0 // pred_fallthru
    _
  %v21 = vld [vmem:[%s0] sm:$0xff]
  %v22 = vld [vmem:[%s0 + $0x8] sm:$0xff]
  %v23 = vld [vmem:[%s0 + $0x10] sm:$0xff]
  %v24 = vld [vmem:[%s0 + $0x18] sm:$0xff]
  %v25 = vld [vmem:[%s0 + $0x20] sm:$0xff]
  %v26 = vld [vmem:[%s0 + $0x28] sm:$0xff]
  %vm27 = vcmask 261120
  %v28 = vsel %vm27, %v21, 0.0
  %29 = vadd.xlane.f32.xlu0 %v28
  %v30 = vpop.xlane.xlu0 %29
  %v31 = vsel %vm27, %v22, 0.0
  %32 = vadd.xlane.f32.xlu0 %v31
  %v33 = vpop.xlane.xlu0 %32
  %v34 = vsel %vm27, %v23, 0.0
  %35 = vadd.xlane.f32.xlu0 %v34
  %v36 = vpop.xlane.xlu0 %35
  %v37 = vsel %vm27, %v24, 0.0
  %38 = vadd.xlane.f32.xlu0 %v37
  %v39 = vpop.xlane.xlu0 %38
  %v40 = vsel %vm27, %v25, 0.0
  %41 = vadd.xlane.f32.xlu0 %v40
  %v42 = vpop.xlane.xlu0 %41
  %v43 = vsel %vm27, %v26, 0.0
  %44 = vadd.xlane.f32.xlu0 %v43
  %v45 = vpop.xlane.xlu0 %44
  %v46 = vrcp.pop 32.0
  %v47 = vmul.f32 %v30, %v46
  %v48 = vmul.f32 %v33, %v46
  %v49 = vmul.f32 %v36, %v46
  %v50 = vmul.f32 %v39, %v46
  %v51 = vmul.f32 %v42, %v46
  %v52 = vmul.f32 %v45, %v46
  %v53 = vsub.f32 %v21, %v47
  %v54 = vsub.f32 %v22, %v48
  %v55 = vsub.f32 %v23, %v49
  %v56 = vsub.f32 %v24, %v50
  %v57 = vsub.f32 %v25, %v51
  %v58 = vsub.f32 %v26, %v52
  %v59 = vmul.f32 %v53, %v53
  %v60 = vmul.f32 %v54, %v54
  %v61 = vmul.f32 %v55, %v55
  %v62 = vmul.f32 %v56, %v56
  %v63 = vmul.f32 %v57, %v57
  %v64 = vmul.f32 %v58, %v58
  %v65 = vsel %vm27, %v59, 0.0
  %66 = vadd.xlane.f32.xlu0 %v65
  %v67 = vpop.xlane.xlu0 %66
  %v68 = vsel %vm27, %v60, 0.0
  %69 = vadd.xlane.f32.xlu0 %v68
  %v70 = vpop.xlane.xlu0 %69
  %v71 = vsel %vm27, %v61, 0.0
  %72 = vadd.xlane.f32.xlu0 %v71
  %v73 = vpop.xlane.xlu0 %72
  %v74 = vsel %vm27, %v62, 0.0
  %75 = vadd.xlane.f32.xlu0 %v74
  %v76 = vpop.xlane.xlu0 %75
  %v77 = vsel %vm27, %v63, 0.0
  %78 = vadd.xlane.f32.xlu0 %v77
  %v79 = vpop.xlane.xlu0 %78
  %v80 = vsel %vm27, %v64, 0.0
  %81 = vadd.xlane.f32.xlu0 %v80
  %v82 = vpop.xlane.xlu0 %81
  %v83 = vmul.f32 %v67, %v46
  %v84 = vmul.f32 %v70, %v46
  %v85 = vmul.f32 %v73, %v46
  %v86 = vmul.f32 %v76, %v46
  %v87 = vmul.f32 %v79, %v46
  %v88 = vmul.f32 %v82, %v46
  %v89 = vadd.f32 %v83, 1e-05
  %v90 = vadd.f32 %v84, 1e-05
  %v91 = vadd.f32 %v85, 1e-05
  %v92 = vadd.f32 %v86, 1e-05
  %v93 = vadd.f32 %v87, 1e-05
  %v94 = vadd.f32 %v88, 1e-05
  %v95 = vrsqrt.pop %v89
  %v96 = vrsqrt.pop %v90
  %v97 = vrsqrt.pop %v91
  %v98 = vrsqrt.pop %v92
  %v99 = vrsqrt.pop %v93
  %v100 = vrsqrt.pop %v94
  %v101 = vmul.f32 %v53, %v95
  %v102 = vmul.f32 %v54, %v96
  %v103 = vmul.f32 %v55, %v97
  %v104 = vmul.f32 %v56, %v98
  %v105 = vmul.f32 %v57, %v99
  %v106 = vmul.f32 %v58, %v100
  %v107 = vld [vmem:[%s1] sm:$0x1]
  %v109 = vlaneseq
  %v110 = vshrl.u32 %v109, 7
  %v111 = vsub.s32 0, %v110
  %v112 = vrot.slane %v107, %v111
  %v114 = vmul.f32 %v101, %v112
  %v115 = vmul.f32 %v102, %v112
  %v116 = vmul.f32 %v103, %v112
  %v117 = vmul.f32 %v104, %v112
  %v118 = vmul.f32 %v105, %v112
  %v119 = vmul.f32 %v106, %v112
  %v120 = vld [vmem:[%s2] sm:$0x1]
  %v122 = vlaneseq
  %v123 = vshrl.u32 %v122, 7
  %v124 = vsub.s32 0, %v123
  %v125 = vrot.slane %v120, %v124
  %v127 = vadd.f32 %v114, %v125
  %v128 = vadd.f32 %v115, %v125
  %v129 = vadd.f32 %v116, %v125
  %v130 = vadd.f32 %v117, %v125
  %v131 = vadd.f32 %v118, %v125
  %v132 = vadd.f32 %v119, %v125
  %v133 = vpack.c.bf16 %v128, %v127
  %v134 = vpack.c.bf16 %v130, %v129
  %v135 = vpack.c.bf16 %v132, %v131
  %v136 = vld [vmem:[%s3] sm:$0xf]
  %v137 = vld [vmem:[%s3 + $0x4] sm:$0xf]
  %v138 = vld [vmem:[%s3 + $0x8] sm:$0xf]
  %v139 = vld [vmem:[%s3 + $0xc] sm:$0xf]
  %v140 = vld [vmem:[%s4] sm:$0x1]
  %v142 = vlaneseq
  %v143 = vshrl.u32 %v142, 7
  %v144 = vsub.s32 0, %v143
  %v145 = vrot.slane %v140, %v144
  %v151 = vunpack.c.l.b16 %v136
  %v152 = vunpack.c.l.b16 %v137
  %v153 = vunpack.c.l.b16 %v138
  %v154 = vunpack.c.l.b16 %v139
  %v155 = vpack.c.b16 %v152, %v151
  %v156 = vpack.c.b16 %v154, %v153
  %v160 = vsel %vm27, %v133, 0
  %v163 = vsel %vm27, %v134, 0
  %v166 = vsel %vm27, %v135, 0
  %168 = vmatprep.subr.bf16.mxu0 0
  %169 = vmatpush1.bf16.msra.mxu0 %v155
  %170 = vmatprep.subr.bf16.mxu0 0
  %171 = vmatpush1.bf16.msra.mxu0 %v156
  %172 = vmatprep.subr.bf16.mxu0 0
  %173 = vmatpush1.bf16.msra.mxu0 0
  %174 = vmatprep.subr.bf16.mxu0 0
  %175 = vmatpush1.bf16.msra.mxu0 0
  %176 = vmatprep.subr.bf16.mxu0 0
  %177 = vmatpush1.bf16.msra.mxu0 0
  %178 = vmatprep.subr.bf16.mxu0 0
  %179 = vmatpush1.bf16.msra.mxu0 0
  %180 = vmatprep.subr.bf16.mxu0 0
  %181 = vmatpush1.bf16.msra.mxu0 0
  %182 = vmatprep.subr.bf16.mxu0 0
  %183 = vmatpush1.bf16.msra.mxu0 0
  %184 = vmatprep.subr.bf16.mxu0 0
  %185 = vmatpush1.bf16.msra.mxu0 0
  %186 = vmatprep.subr.bf16.mxu0 0
  %187 = vmatpush1.bf16.msra.mxu0 0
  %188 = vmatprep.subr.bf16.mxu0 0
  %189 = vmatpush1.bf16.msra.mxu0 0
  %190 = vmatprep.subr.bf16.mxu0 0
  %191 = vmatpush1.bf16.msra.mxu0 0
  %192 = vmatprep.subr.bf16.mxu0 0
  %193 = vmatpush1.bf16.msra.mxu0 0
  %194 = vmatprep.subr.bf16.mxu0 0
  %195 = vmatpush1.bf16.msra.mxu0 0
  %196 = vmatprep.subr.bf16.mxu0 0
  %197 = vmatpush1.bf16.msra.mxu0 0
  %198 = vmatprep.subr.bf16.mxu0 0
  %199 = vmatpush1.bf16.msra.mxu0 0
  %200 = vmatprep.mubr.bf16.mxu0 0
  %201 = vmatmul.mubr.bf16.gmra.mrb[0].mxu0 %v160
  %v202 = vpop.f32.mrb[0].mxu0
  %v203 = vadd.f32 %v145, %v202
  %v204 = vpop.f32.mrb[0].mxu0
  %v205 = vpop.f32.mrb[0].mxu0
  %v206 = vadd.f32 %v145, %v205
  %v207 = vpop.f32.mrb[0].mxu0
  %208 = vmatprep.mubr.bf16.mxu0 0
  %209 = vmatmul.mubr.bf16.gmra.mrb[0].mxu0 %v163
  %v210 = vpop.f32.mrb[0].mxu0
  %v211 = vadd.f32 %v145, %v210
  %v212 = vpop.f32.mrb[0].mxu0
  %v213 = vpop.f32.mrb[0].mxu0
  %v214 = vadd.f32 %v145, %v213
  %v215 = vpop.f32.mrb[0].mxu0
  %216 = vmatprep.mubr.bf16.mxu0 0
  %217 = vmatmul.mubr.bf16.gmra.mrb[0].mxu0 %v166
  %v218 = vpop.f32.mrb[0].mxu0
  %v219 = vadd.f32 %v145, %v218
  %v220 = vpop.f32.mrb[0].mxu0
  %v221 = vpop.f32.mrb[0].mxu0
  %v222 = vadd.f32 %v145, %v221
  %v223 = vpop.f32.mrb[0].mxu0
  %224 = vdwg.mxu0
  %v225 = vmul.f32 %v203, 0.5
  %v226 = vmul.f32 %v206, 0.5
  %v227 = vmul.f32 %v211, 0.5
  %v228 = vmul.f32 %v214, 0.5
  %v229 = vmul.f32 %v219, 0.5
  %v230 = vmul.f32 %v222, 0.5
  %v231 = vmul.f32 %v203, 0.70710677
  %v232 = vmul.f32 %v206, 0.70710677
  %v233 = vmul.f32 %v211, 0.70710677
  %v234 = vmul.f32 %v214, 0.70710677
  %v235 = vmul.f32 %v219, 0.70710677
  %v236 = vmul.f32 %v222, 0.70710677
  %v237 = verf.f32.pop %v231
  %v238 = verf.f32.pop %v232
  %v239 = verf.f32.pop %v233
  %v240 = verf.f32.pop %v234
  %v241 = verf.f32.pop %v235
  %v242 = verf.f32.pop %v236
  %v243 = vadd.f32 %v237, 1.0
  %v244 = vadd.f32 %v238, 1.0
  %v245 = vadd.f32 %v239, 1.0
  %v246 = vadd.f32 %v240, 1.0
  %v247 = vadd.f32 %v241, 1.0
  %v248 = vadd.f32 %v242, 1.0
  %v249 = vmul.f32 %v225, %v243
  %v250 = vmul.f32 %v226, %v244
  %v251 = vmul.f32 %v227, %v245
  %v252 = vmul.f32 %v228, %v246
  %v253 = vmul.f32 %v229, %v247
  %v254 = vmul.f32 %v230, %v248
  %v255 = vpack.c.bf16 %v250, %v249
  %v256 = vpack.c.bf16 %v252, %v251
  %v257 = vpack.c.bf16 %v254, %v253
  %v261 = vunpack.c.l.b16 %v255
  %v262 = vunpack.c.h.b16 %v255
  %v263 = vunpack.c.l.b16 %v256
  %v264 = vunpack.c.h.b16 %v256
  %v265 = vunpack.c.l.b16 %v257
  %v266 = vunpack.c.h.b16 %v257
  %v267 = vpack.c.b16 %v261, %v261
  %v268 = vpack.c.b16 %v262, %v262
  %v269 = vpack.c.b16 %v263, %v263
  %v270 = vpack.c.b16 %v264, %v264
  %v271 = vpack.c.b16 %v265, %v265
  %v272 = vpack.c.b16 %v266, %v266
  %279 = vst [vmem:[%s5] sm:$0xf] %v267
  %280 = vst [vmem:[%s5 + $0x4] sm:$0xf] %v268
  %281 = vst [vmem:[%s5 + $0x8] sm:$0xf] %v269
  %282 = vst [vmem:[%s5 + $0xc] sm:$0xf] %v270
  %283 = vst [vmem:[%s5 + $0x10] sm:$0xf] %v271
  %284 = vst [vmem:[%s5 + $0x14] sm:$0xf] %v272
  // Predicated region
  $region22: #{vit_forward.16} parent=0 // pred_check
    _
  $region23: #{vit_forward.16} parent=0 // pred_check_branch
    %286 = sbr.rel (0) target = $region25
  $region24: #{vit_forward.16} parent=0 // pred_region
    _
  $region25: #{vit_forward.16} parent=0 // pred_fallthru
    _
  // Predicated region
  $region26: #{vit_forward.16} parent=0 // pred_check
    _
  $region27: #{vit_forward.16} parent=0 // pred_check_branch
    %288 = sbr.rel (0) target = $region29
  $region28: #{vit_forward.16} parent=0 // pred_region
    _
  $region29: #{vit_forward.16} parent=0 // pred_fallthru
    _

// kernel: vit_forward.23
$region0: #{vit_forward.23}
  #allocation0 [shape = 'u32[]', space=smem, size = 0x4, offset = 0x4, fixed_abs, tag = 'smem constant byte address 0x4 - core index']
  #allocation1 [shape = 'u32[144,128]{1,0:T(1,128)}', space=vmem, size = 0x12000, scoped, tag = 'internal scratch']
  %s0 = inlined_call_operand.vmem [shape: f32[2,32], index: 0, kind: input, shape index: {}]
  %s1 = inlined_call_operand.vmem [shape: f32[1,32], index: 1, kind: input, shape index: {}]
  %s2 = inlined_call_operand.vmem [shape: f32[1,32], index: 2, kind: input, shape index: {}]
  %s3 = inlined_call_operand.vmem [shape: bf16[32,10], index: 3, kind: input, shape index: {}]
  %s4 = inlined_call_operand.vmem [shape: f32[1,10], index: 4, kind: input, shape index: {}]
  %s5 = inlined_call_operand.hbm [shape: f32[2,10], index: 5, kind: output, shape index: {}]
  %s6 = sld [smem:[#allocation0]]
  $region30: #{vit_forward.23} parent=0
    _
  %s8 = ssub.s32 1, %s6
  %s9 = scalar_select 0, %s8, %s6
  $region1: #{vit_forward.23} parent=0
    #allocation2 [shape = 'u8[1024]{0}', space=vmem, size = 0x400, scoped, tag = 'output window, operand 0, single buffered']
    #allocation3 [shape = 's32[1]{0}', space=sflag, size = 0x4, scoped, tag = 'scoped memory for vit_forward.23']
    %10 = vsyncpa [#allocation3], 0
    // Predicated region
    $region2: #{vit_forward.23} parent=1 // pred_check
      _
    $region3: #{vit_forward.23} parent=1 // pred_check_branch
      %12 = sbr.rel (0) target = $region5
    $region4: #{vit_forward.23} parent=1 // pred_region
      _
    $region5: #{vit_forward.23} parent=1 // pred_fallthru
      _
    // Predicated region
    $region6: #{vit_forward.23} parent=1 // pred_check
      _
    $region7: #{vit_forward.23} parent=1 // pred_check_branch
      %14 = sbr.rel (0) target = $region9
    $region8: #{vit_forward.23} parent=1 // pred_region
      _
    $region9: #{vit_forward.23} parent=1 // pred_fallthru
      _
    // Predicated region
    $region10: #{vit_forward.23} parent=1 // pred_check
      _
    $region11: #{vit_forward.23} parent=1 // pred_check_branch
      %16 = sbr.rel (0) target = $region13
    $region12: #{vit_forward.23} parent=1 // pred_region
      _
    $region13: #{vit_forward.23} parent=1 // pred_fallthru
      _
    // Predicated region
    $region14: #{vit_forward.23} parent=1 // pred_check
      _
    $region15: #{vit_forward.23} parent=1 // pred_check_branch
      %18 = sbr.rel (0) target = $region17
    $region16: #{vit_forward.23} parent=1 // pred_region
      _
    $region17: #{vit_forward.23} parent=1 // pred_fallthru
      _
    // Predicated region
    $region18: #{vit_forward.23} parent=1 // pred_check
      _
    $region19: #{vit_forward.23} parent=1 // pred_check_branch
      %20 = sbr.rel (0) target = $region21
    $region20: #{vit_forward.23} parent=1 // pred_region
      _
    $region21: #{vit_forward.23} parent=1 // pred_fallthru
      _
    %v22 = vld [vmem:[%s0] sm:$0x3]
    %vm23 = vcmask 254976
    %v24 = vsel %vm23, %v22, 0.0
    %25 = vadd.xlane.f32.xlu0 %v24
    %v26 = vpop.xlane.xlu0 %25
    %v27 = vrcp.pop 32.0
    %v28 = vmul.f32 %v26, %v27
    %v29 = vsub.f32 %v22, %v28
    %v30 = vmul.f32 %v29, %v29
    %v31 = vsel %vm23, %v30, 0.0
    %32 = vadd.xlane.f32.xlu0 %v31
    %v33 = vpop.xlane.xlu0 %32
    %v34 = vmul.f32 %v33, %v27
    %v35 = vadd.f32 %v34, 1e-05
    %v36 = vrsqrt.pop %v35
    %v37 = vmul.f32 %v29, %v36
    %v38 = vld [vmem:[%s1] sm:$0x1]
    %v40 = vlaneseq
    %v41 = vshrl.u32 %v40, 7
    %v42 = vsub.s32 0, %v41
    %v43 = vrot.slane %v38, %v42
    %v45 = vmul.f32 %v37, %v43
    %v46 = vld [vmem:[%s2] sm:$0x1]
    %v48 = vlaneseq
    %v49 = vshrl.u32 %v48, 7
    %v50 = vsub.s32 0, %v49
    %v51 = vrot.slane %v46, %v50
    %v53 = vadd.f32 %v45, %v51
    %v54 = vpack.c.bf16 %v53, %v53
    %v55 = vld [vmem:[%s3] sm:$0xf]
    %v56 = vld [vmem:[%s3 + $0x4] sm:$0xf]
    %v57 = vld [vmem:[%s3 + $0x8] sm:$0xf]
    %v58 = vld [vmem:[%s3 + $0xc] sm:$0xf]
    %v59 = vld [vmem:[%s4] sm:$0x1]
    %v61 = vlaneseq
    %v62 = vshrl.u32 %v61, 7
    %v63 = vsub.s32 0, %v62
    %v64 = vrot.slane %v59, %v63
    %v70 = vunpack.c.l.b16 %v55
    %v71 = vunpack.c.l.b16 %v56
    %v72 = vunpack.c.l.b16 %v57
    %v73 = vunpack.c.l.b16 %v58
    %v74 = vpack.c.b16 %v71, %v70
    %v75 = vpack.c.b16 %v73, %v72
    %vm78 = vcmask 261120
    %v80 = vsel %vm78, %v54, 0
    %82 = vmatprep.subr.bf16.mxu0 0
    %83 = vmatpush1.bf16.msra.mxu0 %v74
    %84 = vmatprep.subr.bf16.mxu0 0
    %85 = vmatpush1.bf16.msra.mxu0 %v75
    %86 = vmatprep.subr.bf16.mxu0 0
    %87 = vmatpush1.bf16.msra.mxu0 0
    %88 = vmatprep.subr.bf16.mxu0 0
    %89 = vmatpush1.bf16.msra.mxu0 0
    %90 = vmatprep.subr.bf16.mxu0 0
    %91 = vmatpush1.bf16.msra.mxu0 0
    %92 = vmatprep.subr.bf16.mxu0 0
    %93 = vmatpush1.bf16.msra.mxu0 0
    %94 = vmatprep.subr.bf16.mxu0 0
    %95 = vmatpush1.bf16.msra.mxu0 0
    %96 = vmatprep.subr.bf16.mxu0 0
    %97 = vmatpush1.bf16.msra.mxu0 0
    %98 = vmatprep.subr.bf16.mxu0 0
    %99 = vmatpush1.bf16.msra.mxu0 0
    %100 = vmatprep.subr.bf16.mxu0 0
    %101 = vmatpush1.bf16.msra.mxu0 0
    %102 = vmatprep.subr.bf16.mxu0 0
    %103 = vmatpush1.bf16.msra.mxu0 0
    %104 = vmatprep.subr.bf16.mxu0 0
    %105 = vmatpush1.bf16.msra.mxu0 0
    %106 = vmatprep.subr.bf16.mxu0 0
    %107 = vmatpush1.bf16.msra.mxu0 0
    %108 = vmatprep.subr.bf16.mxu0 0
    %109 = vmatpush1.bf16.msra.mxu0 0
    %110 = vmatprep.subr.bf16.mxu0 0
    %111 = vmatpush1.bf16.msra.mxu0 0
    %112 = vmatprep.subr.bf16.mxu0 0
    %113 = vmatpush1.bf16.msra.mxu0 0
    %114 = vmatprep.mubr.bf16.mxu0 0
    %115 = vmatmul.mubr.bf16.gmra.mrb[0].mxu0 %v80
    %v116 = vpop.f32.mrb[0].mxu0
    %v117 = vadd.f32 %v64, %v116
    %v118 = vpop.f32.mrb[0].mxu0
    %v119 = vpop.f32.mrb[0].mxu0
    %v120 = vpop.f32.mrb[0].mxu0
    %121 = vdwg.mxu0
    %vm122 = vcmask 74752
    %123 = vst.msk [vmem:[#allocation2] sm:$0x3] %vm122, %v117
    // Predicated region
    $region22: #{vit_forward.23} parent=1 // pred_check
      _
    $region23: #{vit_forward.23} parent=1 // pred_check_branch
      %125 = sbr.rel (0) target = $region25
    $region24: #{vit_forward.23} parent=1 // pred_region
      %s127 = ssub.s32 32, 32
      %128 = vsyncadd [#allocation3], %s127
      %s130 = sshll.u32 [#allocation2], 4
      %s131 = int_to_ptr.vmem [resolvable:$true] %s130
      %133 = dma.vmem_to_hbm [thread:$0]  %s131, 32, %s5, [#allocation3]
    $region25: #{vit_forward.23} parent=1 // pred_fallthru
      _
    // Predicated region
    $region26: #{vit_forward.23} parent=1 // pred_check
      _
    $region27: #{vit_forward.23} parent=1 // pred_check_branch
      %135 = sbr.rel (0) target = $region29
    $region28: #{vit_forward.23} parent=1 // pred_region
      %136 = dma.done [#allocation3], 32
    $region29: #{vit_forward.23} parent=1 // pred_fallthru
      _
    %137 = vsyncpa [#allocation3], 1

</llo_original>
